<compile_context>
chip_gen: v7x
topology: tpu7x:2x2x1
jax: 0.10.0
libtpu: 0.0.40
codegen_flags: <defaults>
</compile_context>

<pallas_src>
import math

import jax
import jax.numpy as jnp
from jax.experimental import pallas as pl
from jax.experimental.pallas import tpu as pltpu

LEAKY_SLOPE = 0.01     # F.leaky_relu default negative_slope
BN_EPS = 1e-5
LANE = 128


def _round_up(x, m):
    return ((x + m - 1) // m) * m


def _pair(v):
    return (v, v) if isinstance(v, int) else tuple(v)


# --------------------------------------------------------------------------
# Pallas kernel: tap-accumulated matmul + folded BN + leaky ReLU epilogue
# --------------------------------------------------------------------------
def _conv_bn_leaky_kernel(x_ref, w_ref, scale_ref, bias_ref, o_ref, acc_ref):
    k = pl.program_id(1)

    @pl.when(k == 0)
    def _init():
        acc_ref[...] = jnp.zeros_like(acc_ref)

    # (TM, Cin_p) @ (Cin_p, Cout_p) on the MXU, f32 accumulation.
    acc_ref[...] += jnp.dot(x_ref[0], w_ref[0],
                            preferred_element_type=jnp.float32)

    @pl.when(k == pl.num_programs(1) - 1)
    def _finalize():
        y = acc_ref[...] * scale_ref[...] + bias_ref[...]   # folded BatchNorm
        y = jnp.maximum(y, LEAKY_SLOPE * y)                 # leaky ReLU
        o_ref[...] = y.astype(o_ref.dtype)


def _choose_tm(rows, cin_p, cout_p, out_bytes=4, budget=12 * 1024 * 1024):
    """Pick a row-tile that fits comfortably in VMEM on all TPU generations."""
    tm = 512 if rows >= 512 else _round_up(rows, 8)

    def est(t):
        return (2 * t * cin_p * 2          # double-buffered bf16 activation tile
                + 2 * cin_p * cout_p * 2   # double-buffered bf16 weight tile
                + 2 * t * cout_p * out_bytes   # double-buffered output tile
                + t * cout_p * 4)          # f32 accumulator

    while tm > 8 and est(tm) > budget:
        tm //= 2
    return max(tm, 8)


def fused_conv_bn_leaky_matmul(taps, w, scale, bias, out_dtype=jnp.float32):
    """taps: (KK, R, Cin_p) bf16, w: (KK, Cin_p, Cout_p) bf16,
    scale/bias: (1, Cout_p) f32  ->  (R, Cout_p) out_dtype."""
    kk, rows, cin_p = taps.shape
    _, _, cout_p = w.shape

    tm = _choose_tm(rows, cin_p, cout_p, jnp.dtype(out_dtype).itemsize)
    rows_p = _round_up(rows, tm)
    if rows_p != rows:
        taps = jnp.pad(taps, ((0, 0), (0, rows_p - rows), (0, 0)))

    out = pl.pallas_call(
        _conv_bn_leaky_kernel,
        out_shape=jax.ShapeDtypeStruct((rows_p, cout_p), out_dtype),
        grid_spec=pltpu.PrefetchScalarGridSpec(
            num_scalar_prefetch=0,
            grid=(rows_p // tm, kk),
            in_specs=[
                pl.BlockSpec((1, tm, cin_p), lambda i, k: (k, i, 0)),
                pl.BlockSpec((1, cin_p, cout_p), lambda i, k: (k, 0, 0)),
                pl.BlockSpec((1, cout_p), lambda i, k: (0, 0)),
                pl.BlockSpec((1, cout_p), lambda i, k: (0, 0)),
            ],
            out_specs=pl.BlockSpec((tm, cout_p), lambda i, k: (i, 0)),
            scratch_shapes=[pltpu.VMEM((tm, cout_p), jnp.float32)],
        ),
        compiler_params=pltpu.CompilerParams(
            dimension_semantics=("parallel", "arbitrary"),
            vmem_limit_bytes=32 * 1024 * 1024,
        ),
    )(taps, w, scale, bias)
    return out[:rows]


# --------------------------------------------------------------------------
# Parameter init (deterministic) + BN folding + lane-dense weight packing
# --------------------------------------------------------------------------
def init_bn_conv2d_leaky(key, inplanes, out_channels, kernel_size, stride,
                         padding, dilation=1):
    kh, kw = _pair(kernel_size)
    k1, k2, k3, k4, k5 = jax.random.split(key, 5)
    fan_in = inplanes * kh * kw
    w = jax.random.normal(k1, (out_channels, inplanes, kh, kw),
                          jnp.float32) / math.sqrt(fan_in)          # OIHW
    gamma = jax.random.uniform(k2, (out_channels,), jnp.float32, 0.5, 1.5)
    beta = jax.random.normal(k3, (out_channels,), jnp.float32) * 0.1
    mean = jax.random.normal(k4, (out_channels,), jnp.float32) * 0.1
    var = jax.random.uniform(k5, (out_channels,), jnp.float32, 0.5, 1.5)

    scale = gamma / jnp.sqrt(var + BN_EPS)
    bias = beta - mean * scale

    cin_p = _round_up(inplanes, LANE)
    cout_p = _round_up(out_channels, LANE)

    # (O, I, kh, kw) -> (KK, I, O), zero-padded to lane-dense channel dims.
    w_taps = jnp.transpose(w, (2, 3, 1, 0)).reshape(kh * kw, inplanes,
                                                    out_channels)
    w_taps = jnp.pad(w_taps, ((0, 0), (0, cin_p - inplanes),
                              (0, cout_p - out_channels)))
    scale_p = jnp.pad(scale, (0, cout_p - out_channels)).reshape(1, cout_p)
    bias_p = jnp.pad(bias, (0, cout_p - out_channels)).reshape(1, cout_p)

    return {
        "w_raw": w, "gamma": gamma, "beta": beta, "mean": mean, "var": var,
        "w_taps": w_taps.astype(jnp.bfloat16),
        "scale": scale_p.astype(jnp.float32),
        "bias": bias_p.astype(jnp.float32),
        "inplanes": inplanes, "out_channels": out_channels,
        "kernel_size": (kh, kw), "stride": _pair(stride),
        "padding": _pair(padding), "dilation": _pair(dilation),
        "cin_p": cin_p, "cout_p": cout_p,
    }


# --------------------------------------------------------------------------
# Forward pass (NCHW in / NCHW out, matching the PyTorch module)
# --------------------------------------------------------------------------
def bn_conv2d_leaky_forward(x_nchw, p):
    n, cin, h, w = x_nchw.shape
    kh, kw = p["kernel_size"]
    sh, sw = p["stride"]
    ph, pw = p["padding"]
    dh, dw = p["dilation"]
    cin_p, cout_p = p["cin_p"], p["cout_p"]

    # NCHW -> NHWC, zero-pad channels to lane width, bf16 for the MXU.
    x = jnp.transpose(x_nchw, (0, 2, 3, 1)).astype(jnp.bfloat16)
    if cin_p != cin:
        x = jnp.pad(x, ((0, 0), (0, 0), (0, 0), (0, cin_p - cin)))
    xp = jnp.pad(x, ((0, 0), (ph, ph), (pw, pw), (0, 0)))

    ho = (h + 2 * ph - dh * (kh - 1) - 1) // sh + 1
    wo = (w + 2 * pw - dw * (kw - 1) - 1) // sw + 1
    rows = n * ho * wo

    # Tap decomposition: each (kh, kw) tap is a strided window of the padded
    # input; the kernel accumulates the KK channel matmuls (no wide 9*C im2col
    # slab is ever built).
    # TODO(synk): the tap windows are still gathered/stacked by XLA (one bf16
    #             HBM copy); a fully in-kernel gather needs manual DMA.
    taps = []
    for ikh in range(kh):
        for ikw in range(kw):
            h0, w0 = ikh * dh, ikw * dw
            patch = xp[:, h0:h0 + sh * (ho - 1) + 1:sh,
                          w0:w0 + sw * (wo - 1) + 1:sw, :]
            taps.append(patch.reshape(rows, cin_p))
    taps = jnp.stack(taps, axis=0)

    y = fused_conv_bn_leaky_matmul(taps, p["w_taps"], p["scale"], p["bias"])
    y = y[:, :p["out_channels"]].reshape(n, ho, wo, p["out_channels"])
    return jnp.transpose(y, (0, 3, 1, 2))                      # NHWC -> NCHW


# --------------------------------------------------------------------------
# Pure-JAX reference (lax.conv) — bf16-quantized inputs, f32 math, so the
# comparison isolates kernel correctness from the intended bf16 MXU cast.
# --------------------------------------------------------------------------
def bn_conv2d_leaky_ref(x_nchw, p):
    sh, sw = p["stride"]
    ph, pw = p["padding"]
    dh, dw = p["dilation"]
    x = x_nchw.astype(jnp.bfloat16).astype(jnp.float32)
    w = p["w_raw"].astype(jnp.bfloat16).astype(jnp.float32)
    y = jax.lax.conv_general_dilated(
        x, w, window_strides=(sh, sw), padding=[(ph, ph), (pw, pw)],
        rhs_dilation=(dh, dw),
        dimension_numbers=("NCHW", "OIHW", "NCHW"))
    scale = p["gamma"] / jnp.sqrt(p["var"] + BN_EPS)
    bias = p["beta"] - p["mean"] * scale
    y = y * scale.reshape(1, -1, 1, 1) + bias.reshape(1, -1, 1, 1)
    return jnp.where(y >= 0, y, LEAKY_SLOPE * y)


# --------------------------------------------------------------------------
if __name__ == "__main__":
    key = jax.random.PRNGKey(0)
    kx, kp = jax.random.split(key)

    x = jax.random.normal(kx, (2, 4, 16, 16), jnp.float32)

    configs = [
        dict(inplanes=4, out_channels=8, kernel_size=3, stride=1, padding=1),
        dict(inplanes=4, out_channels=16, kernel_size=3, stride=2, padding=1),
        dict(inplanes=4, out_channels=8, kernel_size=1, stride=1, padding=0),
        dict(inplanes=4, out_channels=8, kernel_size=3, stride=1, padding=2,
             dilation=2),
    ]

    for i, cfg in enumerate(configs):
        params = init_bn_conv2d_leaky(jax.random.fold_in(kp, i), **cfg)
        out = jax.block_until_ready(bn_conv2d_leaky_forward(x, params))
        ref = jax.block_until_ready(bn_conv2d_leaky_ref(x, params))
        assert out.shape == ref.shape, (cfg, out.shape, ref.shape)
        assert bool(jnp.all(jnp.isfinite(out))), cfg
        err = float(jnp.max(jnp.abs(out - ref)))
        assert err < 1e-2, f"config {cfg}: max abs err = {err}"

    print("KERNEL_OK")
</pallas_src>

<mosaic_0001>
module attributes {stable_mosaic.version = 11 : i64} {
  func.func @_conv_bn_leaky_kernel(%arg0: i32, %arg1: i32, %arg2: memref<1x512x128xbf16, #tpu.memory_space<vmem>>, %arg3: memref<1x128x128xbf16, #tpu.memory_space<vmem>>, %arg4: memref<1x128xf32, #tpu.memory_space<vmem>>, %arg5: memref<1x128xf32, #tpu.memory_space<vmem>>, %arg6: memref<512x128xf32, #tpu.memory_space<vmem>>, %arg7: memref<512x128xf32, #tpu.memory_space<vmem>>) attributes {dimension_semantics = [#tpu.dimension_semantics<parallel>, #tpu.dimension_semantics<arbitrary>], iteration_bounds = array<i64: 1, 9>, scalar_prefetch = 0 : i64, scratch_operands = 1 : i64, tpu.core_type = #tpu.core_type<tc>, window_params = [{transform_indices = @transform_0, window_bounds = array<i64: 1, 512, 128>}, {transform_indices = @transform_1, window_bounds = array<i64: 1, 128, 128>}, {pipeline_mode = #tpu.pipeline_mode<synchronous>, transform_indices = @transform_2, window_bounds = array<i64: 1, 128>}, {pipeline_mode = #tpu.pipeline_mode<synchronous>, transform_indices = @transform_3, window_bounds = array<i64: 1, 128>}, {transform_indices = @transform_4, window_bounds = array<i64: 512, 128>}]} {
    %c0_i32 = arith.constant 0 : i32
    %0 = arith.cmpi eq, %arg1, %c0_i32 : i32
    %1 = arith.extui %0 : i1 to i32
    %c0_i32_0 = arith.constant 0 : i32
    %2 = arith.cmpi ne, %1, %c0_i32_0 : i32
    scf.if %2 {
      %cst_11 = arith.constant 0.000000e+00 : f32
      %14 = vector.broadcast %cst_11 : f32 to vector<512x128xf32>
      %c0_12 = arith.constant 0 : index
      %c0_13 = arith.constant 0 : index
      %15 = vector.load %arg7[%c0_12, %c0_13] : memref<512x128xf32, #tpu.memory_space<vmem>>, vector<512x128xf32>
      tpu.vector_store %arg7[%c0_12, %c0_13], %14 {strides = array<i32>} : memref<512x128xf32, #tpu.memory_space<vmem>>, vector<512x128xf32>,
    } else {
    }
    %c0 = arith.constant 0 : index
    %c0_1 = arith.constant 0 : index
    %3 = vector.load %arg7[%c0, %c0_1] : memref<512x128xf32, #tpu.memory_space<vmem>>, vector<512x128xf32>
    %c0_2 = arith.constant 0 : index
    %c0_3 = arith.constant 0 : index
    %c0_4 = arith.constant 0 : index
    %4 = vector.load %arg2[%c0_2, %c0_3, %c0_4] : memref<1x512x128xbf16, #tpu.memory_space<vmem>>, vector<1x512x128xbf16>
    %5 = vector.shape_cast %4 : vector<1x512x128xbf16> to vector<512x128xbf16>
    %c0_5 = arith.constant 0 : index
    %c0_6 = arith.constant 0 : index
    %c0_7 = arith.constant 0 : index
    %6 = vector.load %arg3[%c0_5, %c0_6, %c0_7] : memref<1x128x128xbf16, #tpu.memory_space<vmem>>, vector<1x128x128xbf16>
    %7 = vector.shape_cast %6 : vector<1x128x128xbf16> to vector<128x128xbf16>
    %cst = arith.constant dense<0.000000e+00> : vector<512x128xf32>
    %8 = tpu.matmul %5, %7, %cst {dimension_numbers = #tpu.dot_dimension_numbers<[1], [0], [0], [1], [0, 0, 1, 1], [], []>} : vector<512x128xbf16>, vector<128x128xbf16>, vector<512x128xf32> -> vector<512x128xf32>
    %9 = arith.addf %3, %8 : vector<512x128xf32>
    %c0_8 = arith.constant 0 : index
    %c0_9 = arith.constant 0 : index
    %10 = vector.load %arg7[%c0_8, %c0_9] : memref<512x128xf32, #tpu.memory_space<vmem>>, vector<512x128xf32>
    tpu.vector_store %arg7[%c0_8, %c0_9], %9 {strides = array<i32>} : memref<512x128xf32, #tpu.memory_space<vmem>>, vector<512x128xf32>,
    %c8_i32 = arith.constant 8 : i32
    %11 = arith.cmpi eq, %arg1, %c8_i32 : i32
    %12 = arith.extui %11 : i1 to i32
    %c0_i32_10 = arith.constant 0 : i32
    %13 = arith.cmpi ne, %12, %c0_i32_10 : i32
    scf.if %13 {
      %c0_11 = arith.constant 0 : index
      %c0_12 = arith.constant 0 : index
      %14 = vector.load %arg7[%c0_11, %c0_12] : memref<512x128xf32, #tpu.memory_space<vmem>>, vector<512x128xf32>
      %c0_13 = arith.constant 0 : index
      %c0_14 = arith.constant 0 : index
      %15 = vector.load %arg4[%c0_13, %c0_14] : memref<1x128xf32, #tpu.memory_space<vmem>>, vector<1x128xf32>
      %16 = vector.broadcast %15 : vector<1x128xf32> to vector<512x128xf32>
      %17 = arith.mulf %14, %16 : vector<512x128xf32>
      %c0_15 = arith.constant 0 : index
      %c0_16 = arith.constant 0 : index
      %18 = vector.load %arg5[%c0_15, %c0_16] : memref<1x128xf32, #tpu.memory_space<vmem>>, vector<1x128xf32>
      %19 = vector.broadcast %18 : vector<1x128xf32> to vector<512x128xf32>
      %20 = arith.addf %17, %19 : vector<512x128xf32>
      %cst_17 = arith.constant 0.00999999977 : f32
      %21 = vector.broadcast %cst_17 : f32 to vector<512x128xf32>
      %22 = arith.mulf %21, %20 : vector<512x128xf32>
      %23 = arith.maximumf %20, %22 : vector<512x128xf32>
      %c0_18 = arith.constant 0 : index
      %c0_19 = arith.constant 0 : index
      %24 = vector.load %arg6[%c0_18, %c0_19] : memref<512x128xf32, #tpu.memory_space<vmem>>, vector<512x128xf32>
      tpu.vector_store %arg6[%c0_18, %c0_19], %23 {strides = array<i32>} : memref<512x128xf32, #tpu.memory_space<vmem>>, vector<512x128xf32>,
    } else {
    }
    return
  }
  func.func @transform_0(%arg0: i32, %arg1: i32) -> (i32, i32, i32) {
    %c0_i32 = arith.constant 0 : i32
    %c0_i32_0 = arith.constant 0 : i32
    return %arg1, %arg0, %c0_i32 : i32, i32, i32
  }
  func.func @transform_1(%arg0: i32, %arg1: i32) -> (i32, i32, i32) {
    %c0_i32 = arith.constant 0 : i32
    %c0_i32_0 = arith.constant 0 : i32
    %c0_i32_1 = arith.constant 0 : i32
    return %arg1, %c0_i32, %c0_i32_0 : i32, i32, i32
  }
  func.func @transform_2(%arg0: i32, %arg1: i32) -> (i32, i32) {
    %c0_i32 = arith.constant 0 : i32
    %c0_i32_0 = arith.constant 0 : i32
    %c0_i32_1 = arith.constant 0 : i32
    return %c0_i32, %c0_i32_0 : i32, i32
  }
  func.func @transform_3(%arg0: i32, %arg1: i32) -> (i32, i32) {
    %c0_i32 = arith.constant 0 : i32
    %c0_i32_0 = arith.constant 0 : i32
    %c0_i32_1 = arith.constant 0 : i32
    return %c0_i32, %c0_i32_0 : i32, i32
  }
  func.func @transform_4(%arg0: i32, %arg1: i32) -> (i32, i32) {
    %c0_i32 = arith.constant 0 : i32
    %c0_i32_0 = arith.constant 0 : i32
    return %arg0, %c0_i32 : i32, i32
  }
}

</mosaic_0001>

<llo_original>
// kernel: tpu_custom_call.1
$region0: #{tpu_custom_call.1}
  #allocation0 [shape = 'u32[]', space=smem, size = 0x4, offset = 0x4, fixed_abs, tag = 'smem constant byte address 0x4 - core index']
  #allocation1 [shape = 'u32[144,128]{1,0:T(1,128)}', space=vmem, size = 0x12000, scoped, tag = 'internal scratch']
  #allocation2 [shape = 'f32[512,128]{1,0:T(8,128)}', space=vmem, size = 0x40000, scoped, tag = 'scratch operand']
  %s0 = inlined_call_operand.hbm [shape: bf16[9,512,128], index: 0, kind: input, shape index: {}]
  %s1 = inlined_call_operand.hbm [shape: bf16[9,128,128], index: 1, kind: input, shape index: {}]
  %s2 = inlined_call_operand.hbm [shape: f32[1,128], index: 2, kind: input, shape index: {}]
  %s3 = inlined_call_operand.hbm [shape: f32[1,128], index: 3, kind: input, shape index: {}]
  %s4 = inlined_call_operand.hbm [shape: f32[512,128], index: 4, kind: output, shape index: {}]
  %s5 = sld [smem:[#allocation0]]
  $region73: #{tpu_custom_call.1} parent=0
    _
  %s7 = ssub.s32 1, %s5
  %s8 = scalar_select 0, %s7, %s5
  $region1: #{tpu_custom_call.1} parent=0
    #allocation3 [shape = 'u8[262144]{0}', space=vmem, size = 0x40000, scoped, tag = 'input window, operand 0']
    #allocation4 [shape = 's32[2]{0}', space=sflag, size = 0x8, scoped, tag = 'scoped memory for tpu_custom_call.1']
    #allocation5 [shape = 's32[2]{0}', space=sflag, size = 0x8, scoped, tag = 'scoped memory for tpu_custom_call.1']
    #allocation6 [shape = 'u8[65536]{0}', space=vmem, size = 0x10000, scoped, tag = 'input window, operand 1']
    #allocation7 [shape = 's32[2]{0}', space=sflag, size = 0x8, scoped, tag = 'scoped memory for tpu_custom_call.1']
    #allocation8 [shape = 'u8[512]{0}', space=vmem, size = 0x400, scoped, tag = 'input window, operand 2, single buffered']
    #allocation9 [shape = 'u8[512]{0}', space=vmem, size = 0x400, scoped, tag = 'input window, operand 3, single buffered']
    #allocation10 [shape = 's32[1]{0}', space=sflag, size = 0x4, scoped, tag = 'scoped memory for tpu_custom_call.1']
    #allocation11 [shape = 'u8[262144]{0}', space=vmem, size = 0x40000, scoped, tag = 'output window, operand 0, single buffered']
    %9 = vsyncpa [#allocation4], 0
    %s10 = scalar_lea.sflag [#allocation4], 1
    %11 = vsyncpa %s10, 0
    %12 = vsyncpa [#allocation7], 0
    %s13 = scalar_lea.sflag [#allocation7], 1
    %14 = vsyncpa %s13, 0
    %15 = vsyncpa [#allocation10], 0
    %16 = vsyncpa [#allocation5], 0
    loop: start=0, step=1, limit=11
    $region2: #{tpu_custom_call.1} parent=1 // loop_pre_header
      _
    $region3: #{tpu_custom_call.1} parent=1 // loop_header
      %s18 = sphi 0, %s22
      %p19 = scmp.ge.s32.totalorder %s18, 11
      %s25 = sphi 0, %s37
      %s26 = sphi 0, %s33
      %s27 = sphi 0, %s25
      %s28 = sphi 0, %s26
      %s29 = sphi 0, %s27
      %s30 = sphi 0, %s28
      %s42 = sphi 0, %s44
      %s45 = sphi 0, %s42
      %s46 = sphi 0, %s45
      %s62 = sphi 0, %s46
      %s68 = sphi 0, %s70
      %s71 = sphi 0, %s68
      %s72 = sphi 0, %s71
      %s88 = sphi 0, %s72
      %s92 = sphi 0, %s92
      %s94 = sphi 0, %s92
      %s95 = sphi 0, %s94
      %s109 = sphi 0, %s95
      %s113 = sphi 0, %s113
      %s115 = sphi 0, %s113
      %s116 = sphi 0, %s115
      %s130 = sphi 0, %s116
      %s136 = sphi 0, %s138
      %s139 = sphi 0, %s136
      %s140 = sphi 0, %s139
      %s156 = sphi 0, %s140
    $region4: #{tpu_custom_call.1} parent=1 // loop_header_branch
      %21 = sbr.rel (%p19) target = $region8
    $region5: #{tpu_custom_call.1} parent=1 // loop_body
      %s23 = ssub.s32 %s18, 1
      %s24 = ssub.s32 %s18, 2
      %s31 = sadd.s32 1, %s26
      %p32 = scmp.ge.s32.totalorder %s31, 9
      %s33 = scalar_select %p32, 0, %s31
      %s34 = sadd.s32 1, %s25
      %s35 = scalar_select %p32, %s34, %s25
      %p36 = scmp.ge.s32.totalorder %s35, 1
      %s37 = scalar_select %p36, 0, %s35
      %s38 = ssub.s32 %s26, %s33
      %s39 = ssub.s32 %s25, %s37
      %s40 = sor.u32 %s38, %s39
      %p41 = scmp.eq.s32.totalorder %s40, 0
      %s43 = sadd.s32 %s42, 1
      %s44 = scalar_select %p41, %s42, %s43
      %p47 = pneg %p41
      %p48 = scmp.eq.s32.totalorder %s18, 8
      %p49 = por %p47, %p48
      %p50 = scmp.ne.s32.totalorder %s42, %s45
      %p51 = scmp.eq.s32.totalorder %s18, 0
      %p52 = por %p50, %p51
      %p53 = scmp.ne.s32.totalorder %s42, %s45
      %p54 = scmp.eq.s32.totalorder %s23, 8
      %p55 = por %p53, %p54
      %p56 = scmp.ne.s32.totalorder %s45, %s46
      %p57 = scmp.eq.s32.totalorder %s23, 0
      %p58 = por %p56, %p57
      %p59 = scmp.ne.s32.totalorder %s45, %s46
      %p60 = scmp.eq.s32.totalorder %s24, 8
      %p61 = por %p59, %p60
      %p63 = scmp.ne.s32.totalorder %s46, %s62
      %p64 = scmp.eq.s32.totalorder %s24, 0
      %p65 = por %p63, %p64
      %s66 = ssub.s32 %s26, %s33
      %p67 = scmp.eq.s32.totalorder %s66, 0
      %s69 = sadd.s32 %s68, 1
      %s70 = scalar_select %p67, %s68, %s69
      %p73 = pneg %p67
      %p74 = scmp.eq.s32.totalorder %s18, 8
      %p75 = por %p73, %p74
      %p76 = scmp.ne.s32.totalorder %s68, %s71
      %p77 = scmp.eq.s32.totalorder %s18, 0
      %p78 = por %p76, %p77
      %p79 = scmp.ne.s32.totalorder %s68, %s71
      %p80 = scmp.eq.s32.totalorder %s23, 8
      %p81 = por %p79, %p80
      %p82 = scmp.ne.s32.totalorder %s71, %s72
      %p83 = scmp.eq.s32.totalorder %s23, 0
      %p84 = por %p82, %p83
      %p85 = scmp.ne.s32.totalorder %s71, %s72
      %p86 = scmp.eq.s32.totalorder %s24, 8
      %p87 = por %p85, %p86
      %p89 = scmp.ne.s32.totalorder %s72, %s88
      %p90 = scmp.eq.s32.totalorder %s24, 0
      %p91 = por %p89, %p90
      %s93 = sadd.s32 %s92, 1
      %p96 = scmp.eq.s32.totalorder %s18, 8
      %p97 = scmp.ne.s32.totalorder %s92, %s94
      %p98 = scmp.eq.s32.totalorder %s18, 0
      %p99 = por %p97, %p98
      %p100 = scmp.ne.s32.totalorder %s92, %s94
      %p101 = scmp.eq.s32.totalorder %s23, 8
      %p102 = por %p100, %p101
      %p103 = scmp.ne.s32.totalorder %s94, %s95
      %p104 = scmp.eq.s32.totalorder %s23, 0
      %p105 = por %p103, %p104
      %p106 = scmp.ne.s32.totalorder %s94, %s95
      %p107 = scmp.eq.s32.totalorder %s24, 8
      %p108 = por %p106, %p107
      %p110 = scmp.ne.s32.totalorder %s95, %s109
      %p111 = scmp.eq.s32.totalorder %s24, 0
      %p112 = por %p110, %p111
      %s114 = sadd.s32 %s113, 1
      %p117 = scmp.eq.s32.totalorder %s18, 8
      %p118 = scmp.ne.s32.totalorder %s113, %s115
      %p119 = scmp.eq.s32.totalorder %s18, 0
      %p120 = por %p118, %p119
      %p121 = scmp.ne.s32.totalorder %s113, %s115
      %p122 = scmp.eq.s32.totalorder %s23, 8
      %p123 = por %p121, %p122
      %p124 = scmp.ne.s32.totalorder %s115, %s116
      %p125 = scmp.eq.s32.totalorder %s23, 0
      %p126 = por %p124, %p125
      %p127 = scmp.ne.s32.totalorder %s115, %s116
      %p128 = scmp.eq.s32.totalorder %s24, 8
      %p129 = por %p127, %p128
      %p131 = scmp.ne.s32.totalorder %s116, %s130
      %p132 = scmp.eq.s32.totalorder %s24, 0
      %p133 = por %p131, %p132
      %s134 = ssub.s32 %s25, %s37
      %p135 = scmp.eq.s32.totalorder %s134, 0
      %s137 = sadd.s32 %s136, 1
      %s138 = scalar_select %p135, %s136, %s137
      %p141 = pneg %p135
      %p142 = scmp.eq.s32.totalorder %s18, 8
      %p143 = por %p141, %p142
      %p144 = scmp.ne.s32.totalorder %s136, %s139
      %p145 = scmp.eq.s32.totalorder %s18, 0
      %p146 = por %p144, %p145
      %p147 = scmp.ne.s32.totalorder %s136, %s139
      %p148 = scmp.eq.s32.totalorder %s23, 8
      %p149 = por %p147, %p148
      %p150 = scmp.ne.s32.totalorder %s139, %s140
      %p151 = scmp.eq.s32.totalorder %s23, 0
      %p152 = por %p150, %p151
      %p153 = scmp.ne.s32.totalorder %s139, %s140
      %p154 = scmp.eq.s32.totalorder %s24, 8
      %p155 = por %p153, %p154
      %p157 = scmp.ne.s32.totalorder %s140, %s156
      %p158 = scmp.eq.s32.totalorder %s24, 0
      %p159 = por %p157, %p158
      %p160 = scmp.le.s32.totalorder 1, %s18
      %p161 = scmp.lt.s32.totalorder %s18, 10
      %p162 = pnand %p160, %p161
      %p163 = pneg %p162
      // Predicated region
      $region9: #{tpu_custom_call.1} parent=5 // pred_check
        _
      $region10: #{tpu_custom_call.1} parent=5 // pred_check_branch
        %165 = sbr.rel (%p162) target = $region12
      $region11: #{tpu_custom_call.1} parent=5 // pred_region
        %s166 = ssub.s32 %s18, 1
        // Predicated region
        $region13: #{tpu_custom_call.1} parent=11 // pred_check
          %p167 = pneg %p105
        $region14: #{tpu_custom_call.1} parent=11 // pred_check_branch
          %169 = sbr.rel (%p167) target = $region16
        $region15: #{tpu_custom_call.1} parent=11 // pred_region
          %s171 = ssub.s32 16, 16
          %172 = vsyncadd [#allocation7], %s171
          %s174 = sshll.u32 [#allocation8], 4
          %s175 = int_to_ptr.vmem [resolvable:$true] %s174
          %177 = dma.hbm_to_vmem [thread:$0]  %s2, 16, %s175, [#allocation7]
        $region16: #{tpu_custom_call.1} parent=11 // pred_fallthru
          _
        // Predicated region
        $region17: #{tpu_custom_call.1} parent=11 // pred_check
          %p178 = pneg %p126
        $region18: #{tpu_custom_call.1} parent=11 // pred_check_branch
          %180 = sbr.rel (%p178) target = $region20
        $region19: #{tpu_custom_call.1} parent=11 // pred_region
          %s182 = ssub.s32 16, 16
          %183 = vsyncadd [#allocation10], %s182
          %s185 = sshll.u32 [#allocation9], 4
          %s186 = int_to_ptr.vmem [resolvable:$true] %s185
          %188 = dma.hbm_to_vmem [thread:$0]  %s3, 16, %s186, [#allocation10]
        $region20: #{tpu_custom_call.1} parent=11 // pred_fallthru
          _
      $region12: #{tpu_custom_call.1} parent=5 // pred_fallthru
        _
      %p189 = scmp.lt.s32.totalorder %s18, 9
      // Predicated region
      $region21: #{tpu_custom_call.1} parent=5 // pred_check
        %p190 = pneg %p189
      $region22: #{tpu_custom_call.1} parent=5 // pred_check_branch
        %192 = sbr.rel (%p190) target = $region24
      $region23: #{tpu_custom_call.1} parent=5 // pred_region
        // Predicated region
        $region25: #{tpu_custom_call.1} parent=23 // pred_check
          %p193 = pneg %p52
        $region26: #{tpu_custom_call.1} parent=23 // pred_check_branch
          %195 = sbr.rel (%p193) target = $region28
        $region27: #{tpu_custom_call.1} parent=23 // pred_region
          %s196 = sand.u32 %s42, 1
          %s197 = scalar_lea.sflag [#allocation4], %s196
          %s198 = sand.u32 %s42, 1
          %s199 = smul.addr %s198, 256
          %s200 = scalar_lea.vmem [#allocation3], %s199
          %s201 = smul.u32 64, %s25
          %s203 = ssub.s32 4096, 4096
          %204 = vsyncadd %s197, %s203
          %s205 = smul.addr %s26, 64
          %s206 = sadd.s32 %s201, %s205
          %s207 = smul.addr %s206, 64
          %s208 = scalar_lea.hbm %s0, %s207
          %s209 = sshll.u32 %s200, 4
          %s210 = int_to_ptr.vmem [resolvable:$true] %s209
          %215 = dma.hbm_to_vmem [thread:$0]  %s208, 4096, %s210, %s197, 64, 64, 4
        $region28: #{tpu_custom_call.1} parent=23 // pred_fallthru
          _
        // Predicated region
        $region29: #{tpu_custom_call.1} parent=23 // pred_check
          %p216 = pneg %p78
        $region30: #{tpu_custom_call.1} parent=23 // pred_check_branch
          %218 = sbr.rel (%p216) target = $region32
        $region31: #{tpu_custom_call.1} parent=23 // pred_region
          %s219 = sand.u32 %s18, 1
          %s220 = scalar_lea.sflag [#allocation7], %s219
          %s221 = sand.u32 %s68, 1
          %s222 = smul.addr %s221, 64
          %s223 = scalar_lea.vmem [#allocation6], %s222
          %s225 = ssub.s32 1024, 1024
          %226 = vsyncadd %s220, %s225
          %s227 = smul.addr %s26, 16
          %s228 = smul.addr %s227, 64
          %s229 = scalar_lea.hbm %s1, %s228
          %s230 = sshll.u32 %s223, 4
          %s231 = int_to_ptr.vmem [resolvable:$true] %s230
          %236 = dma.hbm_to_vmem [thread:$0]  %s229, 1024, %s231, %s220, 64, 64, 4
        $region32: #{tpu_custom_call.1} parent=23 // pred_fallthru
          _
      $region24: #{tpu_custom_call.1} parent=5 // pred_fallthru
        _
      %p237 = scmp.le.s32.totalorder 1, %s18
      %p238 = scmp.lt.s32.totalorder %s18, 10
      %p239 = pnand %p237, %p238
      %p240 = pneg %p239
      // Predicated region
      $region33: #{tpu_custom_call.1} parent=5 // pred_check
        _
      $region34: #{tpu_custom_call.1} parent=5 // pred_check_branch
        %242 = sbr.rel (%p239) target = $region36
      $region35: #{tpu_custom_call.1} parent=5 // pred_region
        %s243 = ssub.s32 %s18, 1
        %s244 = sand.u32 %s45, 1
        %s245 = scalar_lea.sflag [#allocation4], %s244
        %s246 = sand.u32 %s45, 1
        %s247 = smul.addr %s246, 256
        %s248 = scalar_lea.vmem [#allocation3], %s247
        // Predicated region
        $region37: #{tpu_custom_call.1} parent=35 // pred_check
          %p249 = pneg %p58
        $region38: #{tpu_custom_call.1} parent=35 // pred_check_branch
          %251 = sbr.rel (%p249) target = $region40
        $region39: #{tpu_custom_call.1} parent=35 // pred_region
          %252 = dma.done %s245, 4096
        $region40: #{tpu_custom_call.1} parent=35 // pred_fallthru
          _
        %s253 = sand.u32 %s23, 1
        %s254 = scalar_lea.sflag [#allocation7], %s253
        %s255 = sand.u32 %s71, 1
        %s256 = smul.addr %s255, 64
        %s257 = scalar_lea.vmem [#allocation6], %s256
        // Predicated region
        $region41: #{tpu_custom_call.1} parent=35 // pred_check
          %p258 = pneg %p84
        $region42: #{tpu_custom_call.1} parent=35 // pred_check_branch
          %260 = sbr.rel (%p258) target = $region44
        $region43: #{tpu_custom_call.1} parent=35 // pred_region
          %261 = dma.done %s254, 1024
        $region44: #{tpu_custom_call.1} parent=35 // pred_fallthru
          _
        // Predicated region
        $region45: #{tpu_custom_call.1} parent=35 // pred_check
          %p262 = pneg %p105
        $region46: #{tpu_custom_call.1} parent=35 // pred_check_branch
          %264 = sbr.rel (%p262) target = $region48
        $region47: #{tpu_custom_call.1} parent=35 // pred_region
          %265 = dma.done [#allocation7], 16
        $region48: #{tpu_custom_call.1} parent=35 // pred_fallthru
          _
        // Predicated region
        $region49: #{tpu_custom_call.1} parent=35 // pred_check
          %p266 = pneg %p126
        $region50: #{tpu_custom_call.1} parent=35 // pred_check_branch
          %268 = sbr.rel (%p266) target = $region52
        $region51: #{tpu_custom_call.1} parent=35 // pred_region
          %269 = dma.done [#allocation10], 16
        $region52: #{tpu_custom_call.1} parent=35 // pred_fallthru
          _
        %s270 = sand.u32 %s45, 1
        %s271 = scalar_lea.sflag [#allocation4], %s270
        %s272 = sand.u32 %s45, 1
        %s273 = smul.addr %s272, 256
        %s274 = scalar_lea.vmem [#allocation3], %s273
        %p275 = pneg %p58
        %p276 = pneg %p55
        %s277 = sand.u32 %s23, 1
        %s278 = scalar_lea.sflag [#allocation7], %s277
        %s279 = sand.u32 %s71, 1
        %s280 = smul.addr %s279, 64
        %s281 = scalar_lea.vmem [#allocation6], %s280
        %p282 = pneg %p84
        %p283 = pneg %p81
        %p284 = pneg %p105
        %p285 = pneg %p102
        %p286 = pneg %p126
        %p287 = pneg %p123
        %p288 = pneg %p152
        %p289 = pneg %p149
        %s290 = smul.u32 64, %s27
        %s291 = smul.u32 64, %s27
        %p293 = scmp.eq.s32.totalorder %s28, 0
        // Predicated region
        $region53: #{tpu_custom_call.1} parent=35 // pred_check
          %p294 = pneg %p293
        $region54: #{tpu_custom_call.1} parent=35 // pred_check_branch
          %296 = sbr.rel (%p294) target = $region56
        $region55: #{tpu_custom_call.1} parent=35 // pred_region
          %297 = vst [vmem:[#allocation2] sm:$0xff] 0.0
          %298 = vst [vmem:[#allocation2 + $0x8] sm:$0xff] 0.0
          %299 = vst [vmem:[#allocation2 + $0x10] sm:$0xff] 0.0
          %300 = vst [vmem:[#allocation2 + $0x18] sm:$0xff] 0.0
          %301 = vst [vmem:[#allocation2 + $0x20] sm:$0xff] 0.0
          %302 = vst [vmem:[#allocation2 + $0x28] sm:$0xff] 0.0
          %303 = vst [vmem:[#allocation2 + $0x30] sm:$0xff] 0.0
          %304 = vst [vmem:[#allocation2 + $0x38] sm:$0xff] 0.0
          %305 = vst [vmem:[#allocation2 + $0x40] sm:$0xff] 0.0
          %306 = vst [vmem:[#allocation2 + $0x48] sm:$0xff] 0.0
          %307 = vst [vmem:[#allocation2 + $0x50] sm:$0xff] 0.0
          %308 = vst [vmem:[#allocation2 + $0x58] sm:$0xff] 0.0
          %309 = vst [vmem:[#allocation2 + $0x60] sm:$0xff] 0.0
          %310 = vst [vmem:[#allocation2 + $0x68] sm:$0xff] 0.0
          %311 = vst [vmem:[#allocation2 + $0x70] sm:$0xff] 0.0
          %312 = vst [vmem:[#allocation2 + $0x78] sm:$0xff] 0.0
          %313 = vst [vmem:[#allocation2 + $0x80] sm:$0xff] 0.0
          %314 = vst [vmem:[#allocation2 + $0x88] sm:$0xff] 0.0
          %315 = vst [vmem:[#allocation2 + $0x90] sm:$0xff] 0.0
          %316 = vst [vmem:[#allocation2 + $0x98] sm:$0xff] 0.0
          %317 = vst [vmem:[#allocation2 + $0xa0] sm:$0xff] 0.0
          %318 = vst [vmem:[#allocation2 + $0xa8] sm:$0xff] 0.0
          %319 = vst [vmem:[#allocation2 + $0xb0] sm:$0xff] 0.0
          %320 = vst [vmem:[#allocation2 + $0xb8] sm:$0xff] 0.0
          %321 = vst [vmem:[#allocation2 + $0xc0] sm:$0xff] 0.0
          %322 = vst [vmem:[#allocation2 + $0xc8] sm:$0xff] 0.0
          %323 = vst [vmem:[#allocation2 + $0xd0] sm:$0xff] 0.0
          %324 = vst [vmem:[#allocation2 + $0xd8] sm:$0xff] 0.0
          %325 = vst [vmem:[#allocation2 + $0xe0] sm:$0xff] 0.0
          %326 = vst [vmem:[#allocation2 + $0xe8] sm:$0xff] 0.0
          %327 = vst [vmem:[#allocation2 + $0xf0] sm:$0xff] 0.0
          %328 = vst [vmem:[#allocation2 + $0xf8] sm:$0xff] 0.0
          %329 = vst [vmem:[#allocation2 + $0x100] sm:$0xff] 0.0
          %330 = vst [vmem:[#allocation2 + $0x108] sm:$0xff] 0.0
          %331 = vst [vmem:[#allocation2 + $0x110] sm:$0xff] 0.0
          %332 = vst [vmem:[#allocation2 + $0x118] sm:$0xff] 0.0
          %333 = vst [vmem:[#allocation2 + $0x120] sm:$0xff] 0.0
          %334 = vst [vmem:[#allocation2 + $0x128] sm:$0xff] 0.0
          %335 = vst [vmem:[#allocation2 + $0x130] sm:$0xff] 0.0
          %336 = vst [vmem:[#allocation2 + $0x138] sm:$0xff] 0.0
          %337 = vst [vmem:[#allocation2 + $0x140] sm:$0xff] 0.0
          %338 = vst [vmem:[#allocation2 + $0x148] sm:$0xff] 0.0
          %339 = vst [vmem:[#allocation2 + $0x150] sm:$0xff] 0.0
          %340 = vst [vmem:[#allocation2 + $0x158] sm:$0xff] 0.0
          %341 = vst [vmem:[#allocation2 + $0x160] sm:$0xff] 0.0
          %342 = vst [vmem:[#allocation2 + $0x168] sm:$0xff] 0.0
          %343 = vst [vmem:[#allocation2 + $0x170] sm:$0xff] 0.0
          %344 = vst [vmem:[#allocation2 + $0x178] sm:$0xff] 0.0
          %345 = vst [vmem:[#allocation2 + $0x180] sm:$0xff] 0.0
          %346 = vst [vmem:[#allocation2 + $0x188] sm:$0xff] 0.0
          %347 = vst [vmem:[#allocation2 + $0x190] sm:$0xff] 0.0
          %348 = vst [vmem:[#allocation2 + $0x198] sm:$0xff] 0.0
          %349 = vst [vmem:[#allocation2 + $0x1a0] sm:$0xff] 0.0
          %350 = vst [vmem:[#allocation2 + $0x1a8] sm:$0xff] 0.0
          %351 = vst [vmem:[#allocation2 + $0x1b0] sm:$0xff] 0.0
          %352 = vst [vmem:[#allocation2 + $0x1b8] sm:$0xff] 0.0
          %353 = vst [vmem:[#allocation2 + $0x1c0] sm:$0xff] 0.0
          %354 = vst [vmem:[#allocation2 + $0x1c8] sm:$0xff] 0.0
          %355 = vst [vmem:[#allocation2 + $0x1d0] sm:$0xff] 0.0
          %356 = vst [vmem:[#allocation2 + $0x1d8] sm:$0xff] 0.0
          %357 = vst [vmem:[#allocation2 + $0x1e0] sm:$0xff] 0.0
          %358 = vst [vmem:[#allocation2 + $0x1e8] sm:$0xff] 0.0
          %359 = vst [vmem:[#allocation2 + $0x1f0] sm:$0xff] 0.0
          %360 = vst [vmem:[#allocation2 + $0x1f8] sm:$0xff] 0.0
        $region56: #{tpu_custom_call.1} parent=35 // pred_fallthru
          _
        %v361 = vld [vmem:[#allocation2] sm:$0xff]
        %v362 = vld [vmem:[#allocation2 + $0x8] sm:$0xff]
        %v363 = vld [vmem:[#allocation2 + $0x10] sm:$0xff]
        %v364 = vld [vmem:[#allocation2 + $0x18] sm:$0xff]
        %v365 = vld [vmem:[#allocation2 + $0x20] sm:$0xff]
        %v366 = vld [vmem:[#allocation2 + $0x28] sm:$0xff]
        %v367 = vld [vmem:[#allocation2 + $0x30] sm:$0xff]
        %v368 = vld [vmem:[#allocation2 + $0x38] sm:$0xff]
        %v369 = vld [vmem:[#allocation2 + $0x40] sm:$0xff]
        %v370 = vld [vmem:[#allocation2 + $0x48] sm:$0xff]
        %v371 = vld [vmem:[#allocation2 + $0x50] sm:$0xff]
        %v372 = vld [vmem:[#allocation2 + $0x58] sm:$0xff]
        %v373 = vld [vmem:[#allocation2 + $0x60] sm:$0xff]
        %v374 = vld [vmem:[#allocation2 + $0x68] sm:$0xff]
        %v375 = vld [vmem:[#allocation2 + $0x70] sm:$0xff]
        %v376 = vld [vmem:[#allocation2 + $0x78] sm:$0xff]
        %v377 = vld [vmem:[#allocation2 + $0x80] sm:$0xff]
        %v378 = vld [vmem:[#allocation2 + $0x88] sm:$0xff]
        %v379 = vld [vmem:[#allocation2 + $0x90] sm:$0xff]
        %v380 = vld [vmem:[#allocation2 + $0x98] sm:$0xff]
        %v381 = vld [vmem:[#allocation2 + $0xa0] sm:$0xff]
        %v382 = vld [vmem:[#allocation2 + $0xa8] sm:$0xff]
        %v383 = vld [vmem:[#allocation2 + $0xb0] sm:$0xff]
        %v384 = vld [vmem:[#allocation2 + $0xb8] sm:$0xff]
        %v385 = vld [vmem:[#allocation2 + $0xc0] sm:$0xff]
        %v386 = vld [vmem:[#allocation2 + $0xc8] sm:$0xff]
        %v387 = vld [vmem:[#allocation2 + $0xd0] sm:$0xff]
        %v388 = vld [vmem:[#allocation2 + $0xd8] sm:$0xff]
        %v389 = vld [vmem:[#allocation2 + $0xe0] sm:$0xff]
        %v390 = vld [vmem:[#allocation2 + $0xe8] sm:$0xff]
        %v391 = vld [vmem:[#allocation2 + $0xf0] sm:$0xff]
        %v392 = vld [vmem:[#allocation2 + $0xf8] sm:$0xff]
        %v393 = vld [vmem:[#allocation2 + $0x100] sm:$0xff]
        %v394 = vld [vmem:[#allocation2 + $0x108] sm:$0xff]
        %v395 = vld [vmem:[#allocation2 + $0x110] sm:$0xff]
        %v396 = vld [vmem:[#allocation2 + $0x118] sm:$0xff]
        %v397 = vld [vmem:[#allocation2 + $0x120] sm:$0xff]
        %v398 = vld [vmem:[#allocation2 + $0x128] sm:$0xff]
        %v399 = vld [vmem:[#allocation2 + $0x130] sm:$0xff]
        %v400 = vld [vmem:[#allocation2 + $0x138] sm:$0xff]
        %v401 = vld [vmem:[#allocation2 + $0x140] sm:$0xff]
        %v402 = vld [vmem:[#allocation2 + $0x148] sm:$0xff]
        %v403 = vld [vmem:[#allocation2 + $0x150] sm:$0xff]
        %v404 = vld [vmem:[#allocation2 + $0x158] sm:$0xff]
        %v405 = vld [vmem:[#allocation2 + $0x160] sm:$0xff]
        %v406 = vld [vmem:[#allocation2 + $0x168] sm:$0xff]
        %v407 = vld [vmem:[#allocation2 + $0x170] sm:$0xff]
        %v408 = vld [vmem:[#allocation2 + $0x178] sm:$0xff]
        %v409 = vld [vmem:[#allocation2 + $0x180] sm:$0xff]
        %v410 = vld [vmem:[#allocation2 + $0x188] sm:$0xff]
        %v411 = vld [vmem:[#allocation2 + $0x190] sm:$0xff]
        %v412 = vld [vmem:[#allocation2 + $0x198] sm:$0xff]
        %v413 = vld [vmem:[#allocation2 + $0x1a0] sm:$0xff]
        %v414 = vld [vmem:[#allocation2 + $0x1a8] sm:$0xff]
        %v415 = vld [vmem:[#allocation2 + $0x1b0] sm:$0xff]
        %v416 = vld [vmem:[#allocation2 + $0x1b8] sm:$0xff]
        %v417 = vld [vmem:[#allocation2 + $0x1c0] sm:$0xff]
        %v418 = vld [vmem:[#allocation2 + $0x1c8] sm:$0xff]
        %v419 = vld [vmem:[#allocation2 + $0x1d0] sm:$0xff]
        %v420 = vld [vmem:[#allocation2 + $0x1d8] sm:$0xff]
        %v421 = vld [vmem:[#allocation2 + $0x1e0] sm:$0xff]
        %v422 = vld [vmem:[#allocation2 + $0x1e8] sm:$0xff]
        %v423 = vld [vmem:[#allocation2 + $0x1f0] sm:$0xff]
        %v424 = vld [vmem:[#allocation2 + $0x1f8] sm:$0xff]
        %v425 = vld [vmem:[%s248] sm:$0xf]
        %v426 = vld [vmem:[%s248 + $0x4] sm:$0xf]
        %v427 = vld [vmem:[%s248 + $0x8] sm:$0xf]
        %v428 = vld [vmem:[%s248 + $0xc] sm:$0xf]
        %v429 = vld [vmem:[%s248 + $0x10] sm:$0xf]
        %v430 = vld [vmem:[%s248 + $0x14] sm:$0xf]
        %v431 = vld [vmem:[%s248 + $0x18] sm:$0xf]
        %v432 = vld [vmem:[%s248 + $0x1c] sm:$0xf]
        %v433 = vld [vmem:[%s248 + $0x20] sm:$0xf]
        %v434 = vld [vmem:[%s248 + $0x24] sm:$0xf]
        %v435 = vld [vmem:[%s248 + $0x28] sm:$0xf]
        %v436 = vld [vmem:[%s248 + $0x2c] sm:$0xf]
        %v437 = vld [vmem:[%s248 + $0x30] sm:$0xf]
        %v438 = vld [vmem:[%s248 + $0x34] sm:$0xf]
        %v439 = vld [vmem:[%s248 + $0x38] sm:$0xf]
        %v440 = vld [vmem:[%s248 + $0x3c] sm:$0xf]
        %v441 = vld [vmem:[%s248 + $0x40] sm:$0xf]
        %v442 = vld [vmem:[%s248 + $0x44] sm:$0xf]
        %v443 = vld [vmem:[%s248 + $0x48] sm:$0xf]
        %v444 = vld [vmem:[%s248 + $0x4c] sm:$0xf]
        %v445 = vld [vmem:[%s248 + $0x50] sm:$0xf]
        %v446 = vld [vmem:[%s248 + $0x54] sm:$0xf]
        %v447 = vld [vmem:[%s248 + $0x58] sm:$0xf]
        %v448 = vld [vmem:[%s248 + $0x5c] sm:$0xf]
        %v449 = vld [vmem:[%s248 + $0x60] sm:$0xf]
        %v450 = vld [vmem:[%s248 + $0x64] sm:$0xf]
        %v451 = vld [vmem:[%s248 + $0x68] sm:$0xf]
        %v452 = vld [vmem:[%s248 + $0x6c] sm:$0xf]
        %v453 = vld [vmem:[%s248 + $0x70] sm:$0xf]
        %v454 = vld [vmem:[%s248 + $0x74] sm:$0xf]
        %v455 = vld [vmem:[%s248 + $0x78] sm:$0xf]
        %v456 = vld [vmem:[%s248 + $0x7c] sm:$0xf]
        %v457 = vld [vmem:[%s248 + $0x80] sm:$0xf]
        %v458 = vld [vmem:[%s248 + $0x84] sm:$0xf]
        %v459 = vld [vmem:[%s248 + $0x88] sm:$0xf]
        %v460 = vld [vmem:[%s248 + $0x8c] sm:$0xf]
        %v461 = vld [vmem:[%s248 + $0x90] sm:$0xf]
        %v462 = vld [vmem:[%s248 + $0x94] sm:$0xf]
        %v463 = vld [vmem:[%s248 + $0x98] sm:$0xf]
        %v464 = vld [vmem:[%s248 + $0x9c] sm:$0xf]
        %v465 = vld [vmem:[%s248 + $0xa0] sm:$0xf]
        %v466 = vld [vmem:[%s248 + $0xa4] sm:$0xf]
        %v467 = vld [vmem:[%s248 + $0xa8] sm:$0xf]
        %v468 = vld [vmem:[%s248 + $0xac] sm:$0xf]
        %v469 = vld [vmem:[%s248 + $0xb0] sm:$0xf]
        %v470 = vld [vmem:[%s248 + $0xb4] sm:$0xf]
        %v471 = vld [vmem:[%s248 + $0xb8] sm:$0xf]
        %v472 = vld [vmem:[%s248 + $0xbc] sm:$0xf]
        %v473 = vld [vmem:[%s248 + $0xc0] sm:$0xf]
        %v474 = vld [vmem:[%s248 + $0xc4] sm:$0xf]
        %v475 = vld [vmem:[%s248 + $0xc8] sm:$0xf]
        %v476 = vld [vmem:[%s248 + $0xcc] sm:$0xf]
        %v477 = vld [vmem:[%s248 + $0xd0] sm:$0xf]
        %v478 = vld [vmem:[%s248 + $0xd4] sm:$0xf]
        %v479 = vld [vmem:[%s248 + $0xd8] sm:$0xf]
        %v480 = vld [vmem:[%s248 + $0xdc] sm:$0xf]
        %v481 = vld [vmem:[%s248 + $0xe0] sm:$0xf]
        %v482 = vld [vmem:[%s248 + $0xe4] sm:$0xf]
        %v483 = vld [vmem:[%s248 + $0xe8] sm:$0xf]
        %v484 = vld [vmem:[%s248 + $0xec] sm:$0xf]
        %v485 = vld [vmem:[%s248 + $0xf0] sm:$0xf]
        %v486 = vld [vmem:[%s248 + $0xf4] sm:$0xf]
        %v487 = vld [vmem:[%s248 + $0xf8] sm:$0xf]
        %v488 = vld [vmem:[%s248 + $0xfc] sm:$0xf]
        %v489 = vld [vmem:[%s257] sm:$0xf]
        %v490 = vld [vmem:[%s257 + $0x4] sm:$0xf]
        %v491 = vld [vmem:[%s257 + $0x8] sm:$0xf]
        %v492 = vld [vmem:[%s257 + $0xc] sm:$0xf]
        %v493 = vld [vmem:[%s257 + $0x10] sm:$0xf]
        %v494 = vld [vmem:[%s257 + $0x14] sm:$0xf]
        %v495 = vld [vmem:[%s257 + $0x18] sm:$0xf]
        %v496 = vld [vmem:[%s257 + $0x1c] sm:$0xf]
        %v497 = vld [vmem:[%s257 + $0x20] sm:$0xf]
        %v498 = vld [vmem:[%s257 + $0x24] sm:$0xf]
        %v499 = vld [vmem:[%s257 + $0x28] sm:$0xf]
        %v500 = vld [vmem:[%s257 + $0x2c] sm:$0xf]
        %v501 = vld [vmem:[%s257 + $0x30] sm:$0xf]
        %v502 = vld [vmem:[%s257 + $0x34] sm:$0xf]
        %v503 = vld [vmem:[%s257 + $0x38] sm:$0xf]
        %v504 = vld [vmem:[%s257 + $0x3c] sm:$0xf]
        %v569 = vunpack.c.l.b16 %v425
        %v570 = vunpack.c.l.b16 %v426
        %v571 = vunpack.c.l.b16 %v427
        %v572 = vunpack.c.l.b16 %v428
        %v573 = vunpack.c.l.b16 %v429
        %v574 = vunpack.c.l.b16 %v430
        %v575 = vunpack.c.l.b16 %v431
        %v576 = vunpack.c.l.b16 %v432
        %v577 = vunpack.c.l.b16 %v433
        %v578 = vunpack.c.l.b16 %v434
        %v579 = vunpack.c.l.b16 %v435
        %v580 = vunpack.c.l.b16 %v436
        %v581 = vunpack.c.l.b16 %v437
        %v582 = vunpack.c.l.b16 %v438
        %v583 = vunpack.c.l.b16 %v439
        %v584 = vunpack.c.l.b16 %v440
        %v585 = vunpack.c.l.b16 %v441
        %v586 = vunpack.c.l.b16 %v442
        %v587 = vunpack.c.l.b16 %v443
        %v588 = vunpack.c.l.b16 %v444
        %v589 = vunpack.c.l.b16 %v445
        %v590 = vunpack.c.l.b16 %v446
        %v591 = vunpack.c.l.b16 %v447
        %v592 = vunpack.c.l.b16 %v448
        %v593 = vunpack.c.l.b16 %v449
        %v594 = vunpack.c.l.b16 %v450
        %v595 = vunpack.c.l.b16 %v451
        %v596 = vunpack.c.l.b16 %v452
        %v597 = vunpack.c.l.b16 %v453
        %v598 = vunpack.c.l.b16 %v454
        %v599 = vunpack.c.l.b16 %v455
        %v600 = vunpack.c.l.b16 %v456
        %v601 = vunpack.c.l.b16 %v457
        %v602 = vunpack.c.l.b16 %v458
        %v603 = vunpack.c.l.b16 %v459
        %v604 = vunpack.c.l.b16 %v460
        %v605 = vunpack.c.l.b16 %v461
        %v606 = vunpack.c.l.b16 %v462
        %v607 = vunpack.c.l.b16 %v463
        %v608 = vunpack.c.l.b16 %v464
        %v609 = vunpack.c.l.b16 %v465
        %v610 = vunpack.c.l.b16 %v466
        %v611 = vunpack.c.l.b16 %v467
        %v612 = vunpack.c.l.b16 %v468
        %v613 = vunpack.c.l.b16 %v469
        %v614 = vunpack.c.l.b16 %v470
        %v615 = vunpack.c.l.b16 %v471
        %v616 = vunpack.c.l.b16 %v472
        %v617 = vunpack.c.l.b16 %v473
        %v618 = vunpack.c.l.b16 %v474
        %v619 = vunpack.c.l.b16 %v475
        %v620 = vunpack.c.l.b16 %v476
        %v621 = vunpack.c.l.b16 %v477
        %v622 = vunpack.c.l.b16 %v478
        %v623 = vunpack.c.l.b16 %v479
        %v624 = vunpack.c.l.b16 %v480
        %v625 = vunpack.c.l.b16 %v481
        %v626 = vunpack.c.l.b16 %v482
        %v627 = vunpack.c.l.b16 %v483
        %v628 = vunpack.c.l.b16 %v484
        %v629 = vunpack.c.l.b16 %v485
        %v630 = vunpack.c.l.b16 %v486
        %v631 = vunpack.c.l.b16 %v487
        %v632 = vunpack.c.l.b16 %v488
        %v633 = vpack.c.b16 %v570, %v569
        %v634 = vpack.c.b16 %v572, %v571
        %v635 = vpack.c.b16 %v574, %v573
        %v636 = vpack.c.b16 %v576, %v575
        %v637 = vpack.c.b16 %v578, %v577
        %v638 = vpack.c.b16 %v580, %v579
        %v639 = vpack.c.b16 %v582, %v581
        %v640 = vpack.c.b16 %v584, %v583
        %v641 = vpack.c.b16 %v586, %v585
        %v642 = vpack.c.b16 %v588, %v587
        %v643 = vpack.c.b16 %v590, %v589
        %v644 = vpack.c.b16 %v592, %v591
        %v645 = vpack.c.b16 %v594, %v593
        %v646 = vpack.c.b16 %v596, %v595
        %v647 = vpack.c.b16 %v598, %v597
        %v648 = vpack.c.b16 %v600, %v599
        %v649 = vpack.c.b16 %v602, %v601
        %v650 = vpack.c.b16 %v604, %v603
        %v651 = vpack.c.b16 %v606, %v605
        %v652 = vpack.c.b16 %v608, %v607
        %v653 = vpack.c.b16 %v610, %v609
        %v654 = vpack.c.b16 %v612, %v611
        %v655 = vpack.c.b16 %v614, %v613
        %v656 = vpack.c.b16 %v616, %v615
        %v657 = vpack.c.b16 %v618, %v617
        %v658 = vpack.c.b16 %v620, %v619
        %v659 = vpack.c.b16 %v622, %v621
        %v660 = vpack.c.b16 %v624, %v623
        %v661 = vpack.c.b16 %v626, %v625
        %v662 = vpack.c.b16 %v628, %v627
        %v663 = vpack.c.b16 %v630, %v629
        %v664 = vpack.c.b16 %v632, %v631
        %v713 = vunpack.c.l.b16 %v489
        %v714 = vunpack.c.l.b16 %v490
        %v715 = vunpack.c.l.b16 %v491
        %v716 = vunpack.c.l.b16 %v492
        %v717 = vunpack.c.l.b16 %v493
        %v718 = vunpack.c.l.b16 %v494
        %v719 = vunpack.c.l.b16 %v495
        %v720 = vunpack.c.l.b16 %v496
        %v721 = vunpack.c.l.b16 %v497
        %v722 = vunpack.c.l.b16 %v498
        %v723 = vunpack.c.l.b16 %v499
        %v724 = vunpack.c.l.b16 %v500
        %v725 = vunpack.c.l.b16 %v501
        %v726 = vunpack.c.l.b16 %v502
        %v727 = vunpack.c.l.b16 %v503
        %v728 = vunpack.c.l.b16 %v504
        %v729 = vpack.c.b16 %v714, %v713
        %v730 = vpack.c.b16 %v716, %v715
        %v731 = vpack.c.b16 %v718, %v717
        %v732 = vpack.c.b16 %v720, %v719
        %v733 = vpack.c.b16 %v722, %v721
        %v734 = vpack.c.b16 %v724, %v723
        %v735 = vpack.c.b16 %v726, %v725
        %v736 = vpack.c.b16 %v728, %v727
        %745 = vmatprep.subr.bf16.mxu0 0
        %746 = vmatpush1.bf16.msra.mxu0 %v729
        %747 = vmatprep.subr.bf16.mxu0 0
        %748 = vmatpush1.bf16.msra.mxu0 %v730
        %749 = vmatprep.subr.bf16.mxu0 0
        %750 = vmatpush1.bf16.msra.mxu0 %v731
        %751 = vmatprep.subr.bf16.mxu0 0
        %752 = vmatpush1.bf16.msra.mxu0 %v732
        %753 = vmatprep.subr.bf16.mxu0 0
        %754 = vmatpush1.bf16.msra.mxu0 %v733
        %755 = vmatprep.subr.bf16.mxu0 0
        %756 = vmatpush1.bf16.msra.mxu0 %v734
        %757 = vmatprep.subr.bf16.mxu0 0
        %758 = vmatpush1.bf16.msra.mxu0 %v735
        %759 = vmatprep.subr.bf16.mxu0 0
        %760 = vmatpush1.bf16.msra.mxu0 %v736
        %761 = vmatprep.subr.bf16.mxu0 0
        %762 = vmatpush1.bf16.msra.mxu0 0
        %763 = vmatprep.subr.bf16.mxu0 0
        %764 = vmatpush1.bf16.msra.mxu0 0
        %765 = vmatprep.subr.bf16.mxu0 0
        %766 = vmatpush1.bf16.msra.mxu0 0
        %767 = vmatprep.subr.bf16.mxu0 0
        %768 = vmatpush1.bf16.msra.mxu0 0
        %769 = vmatprep.subr.bf16.mxu0 0
        %770 = vmatpush1.bf16.msra.mxu0 0
        %771 = vmatprep.subr.bf16.mxu0 0
        %772 = vmatpush1.bf16.msra.mxu0 0
        %773 = vmatprep.subr.bf16.mxu0 0
        %774 = vmatpush1.bf16.msra.mxu0 0
        %775 = vmatprep.subr.bf16.mxu0 0
        %776 = vmatpush1.bf16.msra.mxu0 0
        %777 = vmatprep.mubr.bf16.mxu0 0
        %778 = vmatmul.mubr.bf16.gmra.mrb[0].mxu0 %v633
        %v779 = vpop.f32.mrb[0].mxu0
        %v780 = vadd.f32 0.0, %v779
        %v781 = vpop.f32.mrb[0].mxu0
        %v782 = vpop.f32.mrb[0].mxu0
        %v783 = vadd.f32 0.0, %v782
        %v784 = vpop.f32.mrb[0].mxu0
        %785 = vmatprep.mubr.bf16.mxu0 0
        %786 = vmatmul.mubr.bf16.gmra.mrb[0].mxu0 %v634
        %v787 = vpop.f32.mrb[0].mxu0
        %v788 = vadd.f32 0.0, %v787
        %v789 = vpop.f32.mrb[0].mxu0
        %v790 = vpop.f32.mrb[0].mxu0
        %v791 = vadd.f32 0.0, %v790
        %v792 = vpop.f32.mrb[0].mxu0
        %793 = vmatprep.mubr.bf16.mxu0 0
        %794 = vmatmul.mubr.bf16.gmra.mrb[0].mxu0 %v635
        %v795 = vpop.f32.mrb[0].mxu0
        %v796 = vadd.f32 0.0, %v795
        %v797 = vpop.f32.mrb[0].mxu0
        %v798 = vpop.f32.mrb[0].mxu0
        %v799 = vadd.f32 0.0, %v798
        %v800 = vpop.f32.mrb[0].mxu0
        %801 = vmatprep.mubr.bf16.mxu0 0
        %802 = vmatmul.mubr.bf16.gmra.mrb[0].mxu0 %v636
        %v803 = vpop.f32.mrb[0].mxu0
        %v804 = vadd.f32 0.0, %v803
        %v805 = vpop.f32.mrb[0].mxu0
        %v806 = vpop.f32.mrb[0].mxu0
        %v807 = vadd.f32 0.0, %v806
        %v808 = vpop.f32.mrb[0].mxu0
        %809 = vmatprep.mubr.bf16.mxu0 0
        %810 = vmatmul.mubr.bf16.gmra.mrb[0].mxu0 %v637
        %v811 = vpop.f32.mrb[0].mxu0
        %v812 = vadd.f32 0.0, %v811
        %v813 = vpop.f32.mrb[0].mxu0
        %v814 = vpop.f32.mrb[0].mxu0
        %v815 = vadd.f32 0.0, %v814
        %v816 = vpop.f32.mrb[0].mxu0
        %817 = vmatprep.mubr.bf16.mxu0 0
        %818 = vmatmul.mubr.bf16.gmra.mrb[0].mxu0 %v638
        %v819 = vpop.f32.mrb[0].mxu0
        %v820 = vadd.f32 0.0, %v819
        %v821 = vpop.f32.mrb[0].mxu0
        %v822 = vpop.f32.mrb[0].mxu0
        %v823 = vadd.f32 0.0, %v822
        %v824 = vpop.f32.mrb[0].mxu0
        %825 = vmatprep.mubr.bf16.mxu0 0
        %826 = vmatmul.mubr.bf16.gmra.mrb[0].mxu0 %v639
        %v827 = vpop.f32.mrb[0].mxu0
        %v828 = vadd.f32 0.0, %v827
        %v829 = vpop.f32.mrb[0].mxu0
        %v830 = vpop.f32.mrb[0].mxu0
        %v831 = vadd.f32 0.0, %v830
        %v832 = vpop.f32.mrb[0].mxu0
        %833 = vmatprep.mubr.bf16.mxu0 0
        %834 = vmatmul.mubr.bf16.gmra.mrb[0].mxu0 %v640
        %v835 = vpop.f32.mrb[0].mxu0
        %v836 = vadd.f32 0.0, %v835
        %v837 = vpop.f32.mrb[0].mxu0
        %v838 = vpop.f32.mrb[0].mxu0
        %v839 = vadd.f32 0.0, %v838
        %v840 = vpop.f32.mrb[0].mxu0
        %841 = vmatprep.mubr.bf16.mxu0 0
        %842 = vmatmul.mubr.bf16.gmra.mrb[0].mxu0 %v641
        %v843 = vpop.f32.mrb[0].mxu0
        %v844 = vadd.f32 0.0, %v843
        %v845 = vpop.f32.mrb[0].mxu0
        %v846 = vpop.f32.mrb[0].mxu0
        %v847 = vadd.f32 0.0, %v846
        %v848 = vpop.f32.mrb[0].mxu0
        %849 = vmatprep.mubr.bf16.mxu0 0
        %850 = vmatmul.mubr.bf16.gmra.mrb[0].mxu0 %v642
        %v851 = vpop.f32.mrb[0].mxu0
        %v852 = vadd.f32 0.0, %v851
        %v853 = vpop.f32.mrb[0].mxu0
        %v854 = vpop.f32.mrb[0].mxu0
        %v855 = vadd.f32 0.0, %v854
        %v856 = vpop.f32.mrb[0].mxu0
        %857 = vmatprep.mubr.bf16.mxu0 0
        %858 = vmatmul.mubr.bf16.gmra.mrb[0].mxu0 %v643
        %v859 = vpop.f32.mrb[0].mxu0
        %v860 = vadd.f32 0.0, %v859
        %v861 = vpop.f32.mrb[0].mxu0
        %v862 = vpop.f32.mrb[0].mxu0
        %v863 = vadd.f32 0.0, %v862
        %v864 = vpop.f32.mrb[0].mxu0
        %865 = vmatprep.mubr.bf16.mxu0 0
        %866 = vmatmul.mubr.bf16.gmra.mrb[0].mxu0 %v644
        %v867 = vpop.f32.mrb[0].mxu0
        %v868 = vadd.f32 0.0, %v867
        %v869 = vpop.f32.mrb[0].mxu0
        %v870 = vpop.f32.mrb[0].mxu0
        %v871 = vadd.f32 0.0, %v870
        %v872 = vpop.f32.mrb[0].mxu0
        %873 = vmatprep.mubr.bf16.mxu0 0
        %874 = vmatmul.mubr.bf16.gmra.mrb[0].mxu0 %v645
        %v875 = vpop.f32.mrb[0].mxu0
        %v876 = vadd.f32 0.0, %v875
        %v877 = vpop.f32.mrb[0].mxu0
        %v878 = vpop.f32.mrb[0].mxu0
        %v879 = vadd.f32 0.0, %v878
        %v880 = vpop.f32.mrb[0].mxu0
        %881 = vmatprep.mubr.bf16.mxu0 0
        %882 = vmatmul.mubr.bf16.gmra.mrb[0].mxu0 %v646
        %v883 = vpop.f32.mrb[0].mxu0
        %v884 = vadd.f32 0.0, %v883
        %v885 = vpop.f32.mrb[0].mxu0
        %v886 = vpop.f32.mrb[0].mxu0
        %v887 = vadd.f32 0.0, %v886
        %v888 = vpop.f32.mrb[0].mxu0
        %889 = vmatprep.mubr.bf16.mxu0 0
        %890 = vmatmul.mubr.bf16.gmra.mrb[0].mxu0 %v647
        %v891 = vpop.f32.mrb[0].mxu0
        %v892 = vadd.f32 0.0, %v891
        %v893 = vpop.f32.mrb[0].mxu0
        %v894 = vpop.f32.mrb[0].mxu0
        %v895 = vadd.f32 0.0, %v894
        %v896 = vpop.f32.mrb[0].mxu0
        %897 = vmatprep.mubr.bf16.mxu0 0
        %898 = vmatmul.mubr.bf16.gmra.mrb[0].mxu0 %v648
        %v899 = vpop.f32.mrb[0].mxu0
        %v900 = vadd.f32 0.0, %v899
        %v901 = vpop.f32.mrb[0].mxu0
        %v902 = vpop.f32.mrb[0].mxu0
        %v903 = vadd.f32 0.0, %v902
        %v904 = vpop.f32.mrb[0].mxu0
        %905 = vmatprep.mubr.bf16.mxu0 0
        %906 = vmatmul.mubr.bf16.gmra.mrb[0].mxu0 %v649
        %v907 = vpop.f32.mrb[0].mxu0
        %v908 = vadd.f32 0.0, %v907
        %v909 = vpop.f32.mrb[0].mxu0
        %v910 = vpop.f32.mrb[0].mxu0
        %v911 = vadd.f32 0.0, %v910
        %v912 = vpop.f32.mrb[0].mxu0
        %913 = vmatprep.mubr.bf16.mxu0 0
        %914 = vmatmul.mubr.bf16.gmra.mrb[0].mxu0 %v650
        %v915 = vpop.f32.mrb[0].mxu0
        %v916 = vadd.f32 0.0, %v915
        %v917 = vpop.f32.mrb[0].mxu0
        %v918 = vpop.f32.mrb[0].mxu0
        %v919 = vadd.f32 0.0, %v918
        %v920 = vpop.f32.mrb[0].mxu0
        %921 = vmatprep.mubr.bf16.mxu0 0
        %922 = vmatmul.mubr.bf16.gmra.mrb[0].mxu0 %v651
        %v923 = vpop.f32.mrb[0].mxu0
        %v924 = vadd.f32 0.0, %v923
        %v925 = vpop.f32.mrb[0].mxu0
        %v926 = vpop.f32.mrb[0].mxu0
        %v927 = vadd.f32 0.0, %v926
        %v928 = vpop.f32.mrb[0].mxu0
        %929 = vmatprep.mubr.bf16.mxu0 0
        %930 = vmatmul.mubr.bf16.gmra.mrb[0].mxu0 %v652
        %v931 = vpop.f32.mrb[0].mxu0
        %v932 = vadd.f32 0.0, %v931
        %v933 = vpop.f32.mrb[0].mxu0
        %v934 = vpop.f32.mrb[0].mxu0
        %v935 = vadd.f32 0.0, %v934
        %v936 = vpop.f32.mrb[0].mxu0
        %937 = vmatprep.mubr.bf16.mxu0 0
        %938 = vmatmul.mubr.bf16.gmra.mrb[0].mxu0 %v653
        %v939 = vpop.f32.mrb[0].mxu0
        %v940 = vadd.f32 0.0, %v939
        %v941 = vpop.f32.mrb[0].mxu0
        %v942 = vpop.f32.mrb[0].mxu0
        %v943 = vadd.f32 0.0, %v942
        %v944 = vpop.f32.mrb[0].mxu0
        %945 = vmatprep.mubr.bf16.mxu0 0
        %946 = vmatmul.mubr.bf16.gmra.mrb[0].mxu0 %v654
        %v947 = vpop.f32.mrb[0].mxu0
        %v948 = vadd.f32 0.0, %v947
        %v949 = vpop.f32.mrb[0].mxu0
        %v950 = vpop.f32.mrb[0].mxu0
        %v951 = vadd.f32 0.0, %v950
        %v952 = vpop.f32.mrb[0].mxu0
        %953 = vmatprep.mubr.bf16.mxu0 0
        %954 = vmatmul.mubr.bf16.gmra.mrb[0].mxu0 %v655
        %v955 = vpop.f32.mrb[0].mxu0
        %v956 = vadd.f32 0.0, %v955
        %v957 = vpop.f32.mrb[0].mxu0
        %v958 = vpop.f32.mrb[0].mxu0
        %v959 = vadd.f32 0.0, %v958
        %v960 = vpop.f32.mrb[0].mxu0
        %961 = vmatprep.mubr.bf16.mxu0 0
        %962 = vmatmul.mubr.bf16.gmra.mrb[0].mxu0 %v656
        %v963 = vpop.f32.mrb[0].mxu0
        %v964 = vadd.f32 0.0, %v963
        %v965 = vpop.f32.mrb[0].mxu0
        %v966 = vpop.f32.mrb[0].mxu0
        %v967 = vadd.f32 0.0, %v966
        %v968 = vpop.f32.mrb[0].mxu0
        %969 = vmatprep.mubr.bf16.mxu0 0
        %970 = vmatmul.mubr.bf16.gmra.mrb[0].mxu0 %v657
        %v971 = vpop.f32.mrb[0].mxu0
        %v972 = vadd.f32 0.0, %v971
        %v973 = vpop.f32.mrb[0].mxu0
        %v974 = vpop.f32.mrb[0].mxu0
        %v975 = vadd.f32 0.0, %v974
        %v976 = vpop.f32.mrb[0].mxu0
        %977 = vmatprep.mubr.bf16.mxu0 0
        %978 = vmatmul.mubr.bf16.gmra.mrb[0].mxu0 %v658
        %v979 = vpop.f32.mrb[0].mxu0
        %v980 = vadd.f32 0.0, %v979
        %v981 = vpop.f32.mrb[0].mxu0
        %v982 = vpop.f32.mrb[0].mxu0
        %v983 = vadd.f32 0.0, %v982
        %v984 = vpop.f32.mrb[0].mxu0
        %985 = vmatprep.mubr.bf16.mxu0 0
        %986 = vmatmul.mubr.bf16.gmra.mrb[0].mxu0 %v659
        %v987 = vpop.f32.mrb[0].mxu0
        %v988 = vadd.f32 0.0, %v987
        %v989 = vpop.f32.mrb[0].mxu0
        %v990 = vpop.f32.mrb[0].mxu0
        %v991 = vadd.f32 0.0, %v990
        %v992 = vpop.f32.mrb[0].mxu0
        %993 = vmatprep.mubr.bf16.mxu0 0
        %994 = vmatmul.mubr.bf16.gmra.mrb[0].mxu0 %v660
        %v995 = vpop.f32.mrb[0].mxu0
        %v996 = vadd.f32 0.0, %v995
        %v997 = vpop.f32.mrb[0].mxu0
        %v998 = vpop.f32.mrb[0].mxu0
        %v999 = vadd.f32 0.0, %v998
        %v1000 = vpop.f32.mrb[0].mxu0
        %1001 = vmatprep.mubr.bf16.mxu0 0
        %1002 = vmatmul.mubr.bf16.gmra.mrb[0].mxu0 %v661
        %v1003 = vpop.f32.mrb[0].mxu0
        %v1004 = vadd.f32 0.0, %v1003
        %v1005 = vpop.f32.mrb[0].mxu0
        %v1006 = vpop.f32.mrb[0].mxu0
        %v1007 = vadd.f32 0.0, %v1006
        %v1008 = vpop.f32.mrb[0].mxu0
        %1009 = vmatprep.mubr.bf16.mxu0 0
        %1010 = vmatmul.mubr.bf16.gmra.mrb[0].mxu0 %v662
        %v1011 = vpop.f32.mrb[0].mxu0
        %v1012 = vadd.f32 0.0, %v1011
        %v1013 = vpop.f32.mrb[0].mxu0
        %v1014 = vpop.f32.mrb[0].mxu0
        %v1015 = vadd.f32 0.0, %v1014
        %v1016 = vpop.f32.mrb[0].mxu0
        %1017 = vmatprep.mubr.bf16.mxu0 0
        %1018 = vmatmul.mubr.bf16.gmra.mrb[0].mxu0 %v663
        %v1019 = vpop.f32.mrb[0].mxu0
        %v1020 = vadd.f32 0.0, %v1019
        %v1021 = vpop.f32.mrb[0].mxu0
        %v1022 = vpop.f32.mrb[0].mxu0
        %v1023 = vadd.f32 0.0, %v1022
        %v1024 = vpop.f32.mrb[0].mxu0
        %1025 = vmatprep.mubr.bf16.mxu0 0
        %1026 = vmatmul.mubr.bf16.gmra.mrb[0].mxu0 %v664
        %v1027 = vpop.f32.mrb[0].mxu0
        %v1028 = vadd.f32 0.0, %v1027
        %v1029 = vpop.f32.mrb[0].mxu0
        %v1030 = vpop.f32.mrb[0].mxu0
        %v1031 = vadd.f32 0.0, %v1030
        %v1032 = vpop.f32.mrb[0].mxu0
        %1033 = vdwg.mxu0
        %v1034 = vadd.f32 %v361, %v780
        %v1035 = vadd.f32 %v362, %v783
        %v1036 = vadd.f32 %v363, %v788
        %v1037 = vadd.f32 %v364, %v791
        %v1038 = vadd.f32 %v365, %v796
        %v1039 = vadd.f32 %v366, %v799
        %v1040 = vadd.f32 %v367, %v804
        %v1041 = vadd.f32 %v368, %v807
        %v1042 = vadd.f32 %v369, %v812
        %v1043 = vadd.f32 %v370, %v815
        %v1044 = vadd.f32 %v371, %v820
        %v1045 = vadd.f32 %v372, %v823
        %v1046 = vadd.f32 %v373, %v828
        %v1047 = vadd.f32 %v374, %v831
        %v1048 = vadd.f32 %v375, %v836
        %v1049 = vadd.f32 %v376, %v839
        %v1050 = vadd.f32 %v377, %v844
        %v1051 = vadd.f32 %v378, %v847
        %v1052 = vadd.f32 %v379, %v852
        %v1053 = vadd.f32 %v380, %v855
        %v1054 = vadd.f32 %v381, %v860
        %v1055 = vadd.f32 %v382, %v863
        %v1056 = vadd.f32 %v383, %v868
        %v1057 = vadd.f32 %v384, %v871
        %v1058 = vadd.f32 %v385, %v876
        %v1059 = vadd.f32 %v386, %v879
        %v1060 = vadd.f32 %v387, %v884
        %v1061 = vadd.f32 %v388, %v887
        %v1062 = vadd.f32 %v389, %v892
        %v1063 = vadd.f32 %v390, %v895
        %v1064 = vadd.f32 %v391, %v900
        %v1065 = vadd.f32 %v392, %v903
        %v1066 = vadd.f32 %v393, %v908
        %v1067 = vadd.f32 %v394, %v911
        %v1068 = vadd.f32 %v395, %v916
        %v1069 = vadd.f32 %v396, %v919
        %v1070 = vadd.f32 %v397, %v924
        %v1071 = vadd.f32 %v398, %v927
        %v1072 = vadd.f32 %v399, %v932
        %v1073 = vadd.f32 %v400, %v935
        %v1074 = vadd.f32 %v401, %v940
        %v1075 = vadd.f32 %v402, %v943
        %v1076 = vadd.f32 %v403, %v948
        %v1077 = vadd.f32 %v404, %v951
        %v1078 = vadd.f32 %v405, %v956
        %v1079 = vadd.f32 %v406, %v959
        %v1080 = vadd.f32 %v407, %v964
        %v1081 = vadd.f32 %v408, %v967
        %v1082 = vadd.f32 %v409, %v972
        %v1083 = vadd.f32 %v410, %v975
        %v1084 = vadd.f32 %v411, %v980
        %v1085 = vadd.f32 %v412, %v983
        %v1086 = vadd.f32 %v413, %v988
        %v1087 = vadd.f32 %v414, %v991
        %v1088 = vadd.f32 %v415, %v996
        %v1089 = vadd.f32 %v416, %v999
        %v1090 = vadd.f32 %v417, %v1004
        %v1091 = vadd.f32 %v418, %v1007
        %v1092 = vadd.f32 %v419, %v1012
        %v1093 = vadd.f32 %v420, %v1015
        %v1094 = vadd.f32 %v421, %v1020
        %v1095 = vadd.f32 %v422, %v1023
        %v1096 = vadd.f32 %v423, %v1028
        %v1097 = vadd.f32 %v424, %v1031
        %1098 = vst [vmem:[#allocation2] sm:$0xff] %v1034
        %1099 = vst [vmem:[#allocation2 + $0x8] sm:$0xff] %v1035
        %1100 = vst [vmem:[#allocation2 + $0x10] sm:$0xff] %v1036
        %1101 = vst [vmem:[#allocation2 + $0x18] sm:$0xff] %v1037
        %1102 = vst [vmem:[#allocation2 + $0x20] sm:$0xff] %v1038
        %1103 = vst [vmem:[#allocation2 + $0x28] sm:$0xff] %v1039
        %1104 = vst [vmem:[#allocation2 + $0x30] sm:$0xff] %v1040
        %1105 = vst [vmem:[#allocation2 + $0x38] sm:$0xff] %v1041
        %1106 = vst [vmem:[#allocation2 + $0x40] sm:$0xff] %v1042
        %1107 = vst [vmem:[#allocation2 + $0x48] sm:$0xff] %v1043
        %1108 = vst [vmem:[#allocation2 + $0x50] sm:$0xff] %v1044
        %1109 = vst [vmem:[#allocation2 + $0x58] sm:$0xff] %v1045
        %1110 = vst [vmem:[#allocation2 + $0x60] sm:$0xff] %v1046
        %1111 = vst [vmem:[#allocation2 + $0x68] sm:$0xff] %v1047
        %1112 = vst [vmem:[#allocation2 + $0x70] sm:$0xff] %v1048
        %1113 = vst [vmem:[#allocation2 + $0x78] sm:$0xff] %v1049
        %1114 = vst [vmem:[#allocation2 + $0x80] sm:$0xff] %v1050
        %1115 = vst [vmem:[#allocation2 + $0x88] sm:$0xff] %v1051
        %1116 = vst [vmem:[#allocation2 + $0x90] sm:$0xff] %v1052
        %1117 = vst [vmem:[#allocation2 + $0x98] sm:$0xff] %v1053
        %1118 = vst [vmem:[#allocation2 + $0xa0] sm:$0xff] %v1054
        %1119 = vst [vmem:[#allocation2 + $0xa8] sm:$0xff] %v1055
        %1120 = vst [vmem:[#allocation2 + $0xb0] sm:$0xff] %v1056
        %1121 = vst [vmem:[#allocation2 + $0xb8] sm:$0xff] %v1057
        %1122 = vst [vmem:[#allocation2 + $0xc0] sm:$0xff] %v1058
        %1123 = vst [vmem:[#allocation2 + $0xc8] sm:$0xff] %v1059
        %1124 = vst [vmem:[#allocation2 + $0xd0] sm:$0xff] %v1060
        %1125 = vst [vmem:[#allocation2 + $0xd8] sm:$0xff] %v1061
        %1126 = vst [vmem:[#allocation2 + $0xe0] sm:$0xff] %v1062
        %1127 = vst [vmem:[#allocation2 + $0xe8] sm:$0xff] %v1063
        %1128 = vst [vmem:[#allocation2 + $0xf0] sm:$0xff] %v1064
        %1129 = vst [vmem:[#allocation2 + $0xf8] sm:$0xff] %v1065
        %1130 = vst [vmem:[#allocation2 + $0x100] sm:$0xff] %v1066
        %1131 = vst [vmem:[#allocation2 + $0x108] sm:$0xff] %v1067
        %1132 = vst [vmem:[#allocation2 + $0x110] sm:$0xff] %v1068
        %1133 = vst [vmem:[#allocation2 + $0x118] sm:$0xff] %v1069
        %1134 = vst [vmem:[#allocation2 + $0x120] sm:$0xff] %v1070
        %1135 = vst [vmem:[#allocation2 + $0x128] sm:$0xff] %v1071
        %1136 = vst [vmem:[#allocation2 + $0x130] sm:$0xff] %v1072
        %1137 = vst [vmem:[#allocation2 + $0x138] sm:$0xff] %v1073
        %1138 = vst [vmem:[#allocation2 + $0x140] sm:$0xff] %v1074
        %1139 = vst [vmem:[#allocation2 + $0x148] sm:$0xff] %v1075
        %1140 = vst [vmem:[#allocation2 + $0x150] sm:$0xff] %v1076
        %1141 = vst [vmem:[#allocation2 + $0x158] sm:$0xff] %v1077
        %1142 = vst [vmem:[#allocation2 + $0x160] sm:$0xff] %v1078
        %1143 = vst [vmem:[#allocation2 + $0x168] sm:$0xff] %v1079
        %1144 = vst [vmem:[#allocation2 + $0x170] sm:$0xff] %v1080
        %1145 = vst [vmem:[#allocation2 + $0x178] sm:$0xff] %v1081
        %1146 = vst [vmem:[#allocation2 + $0x180] sm:$0xff] %v1082
        %1147 = vst [vmem:[#allocation2 + $0x188] sm:$0xff] %v1083
        %1148 = vst [vmem:[#allocation2 + $0x190] sm:$0xff] %v1084
        %1149 = vst [vmem:[#allocation2 + $0x198] sm:$0xff] %v1085
        %1150 = vst [vmem:[#allocation2 + $0x1a0] sm:$0xff] %v1086
        %1151 = vst [vmem:[#allocation2 + $0x1a8] sm:$0xff] %v1087
        %1152 = vst [vmem:[#allocation2 + $0x1b0] sm:$0xff] %v1088
        %1153 = vst [vmem:[#allocation2 + $0x1b8] sm:$0xff] %v1089
        %1154 = vst [vmem:[#allocation2 + $0x1c0] sm:$0xff] %v1090
        %1155 = vst [vmem:[#allocation2 + $0x1c8] sm:$0xff] %v1091
        %1156 = vst [vmem:[#allocation2 + $0x1d0] sm:$0xff] %v1092
        %1157 = vst [vmem:[#allocation2 + $0x1d8] sm:$0xff] %v1093
        %1158 = vst [vmem:[#allocation2 + $0x1e0] sm:$0xff] %v1094
        %1159 = vst [vmem:[#allocation2 + $0x1e8] sm:$0xff] %v1095
        %1160 = vst [vmem:[#allocation2 + $0x1f0] sm:$0xff] %v1096
        %1161 = vst [vmem:[#allocation2 + $0x1f8] sm:$0xff] %v1097
        %p1162 = scmp.eq.s32.totalorder %s28, 8
        // Predicated region
        $region57: #{tpu_custom_call.1} parent=35 // pred_check
          %p1163 = pneg %p1162
        $region58: #{tpu_custom_call.1} parent=35 // pred_check_branch
          %1165 = sbr.rel (%p1163) target = $region60
        $region59: #{tpu_custom_call.1} parent=35 // pred_region
          %v1166 = vld [vmem:[#allocation2] sm:$0xff]
          %v1167 = vld [vmem:[#allocation2 + $0x8] sm:$0xff]
          %v1168 = vld [vmem:[#allocation2 + $0x10] sm:$0xff]
          %v1169 = vld [vmem:[#allocation2 + $0x18] sm:$0xff]
          %v1170 = vld [vmem:[#allocation2 + $0x20] sm:$0xff]
          %v1171 = vld [vmem:[#allocation2 + $0x28] sm:$0xff]
          %v1172 = vld [vmem:[#allocation2 + $0x30] sm:$0xff]
          %v1173 = vld [vmem:[#allocation2 + $0x38] sm:$0xff]
          %v1174 = vld [vmem:[#allocation2 + $0x40] sm:$0xff]
          %v1175 = vld [vmem:[#allocation2 + $0x48] sm:$0xff]
          %v1176 = vld [vmem:[#allocation2 + $0x50] sm:$0xff]
          %v1177 = vld [vmem:[#allocation2 + $0x58] sm:$0xff]
          %v1178 = vld [vmem:[#allocation2 + $0x60] sm:$0xff]
          %v1179 = vld [vmem:[#allocation2 + $0x68] sm:$0xff]
          %v1180 = vld [vmem:[#allocation2 + $0x70] sm:$0xff]
          %v1181 = vld [vmem:[#allocation2 + $0x78] sm:$0xff]
          %v1182 = vld [vmem:[#allocation2 + $0x80] sm:$0xff]
          %v1183 = vld [vmem:[#allocation2 + $0x88] sm:$0xff]
          %v1184 = vld [vmem:[#allocation2 + $0x90] sm:$0xff]
          %v1185 = vld [vmem:[#allocation2 + $0x98] sm:$0xff]
          %v1186 = vld [vmem:[#allocation2 + $0xa0] sm:$0xff]
          %v1187 = vld [vmem:[#allocation2 + $0xa8] sm:$0xff]
          %v1188 = vld [vmem:[#allocation2 + $0xb0] sm:$0xff]
          %v1189 = vld [vmem:[#allocation2 + $0xb8] sm:$0xff]
          %v1190 = vld [vmem:[#allocation2 + $0xc0] sm:$0xff]
          %v1191 = vld [vmem:[#allocation2 + $0xc8] sm:$0xff]
          %v1192 = vld [vmem:[#allocation2 + $0xd0] sm:$0xff]
          %v1193 = vld [vmem:[#allocation2 + $0xd8] sm:$0xff]
          %v1194 = vld [vmem:[#allocation2 + $0xe0] sm:$0xff]
          %v1195 = vld [vmem:[#allocation2 + $0xe8] sm:$0xff]
          %v1196 = vld [vmem:[#allocation2 + $0xf0] sm:$0xff]
          %v1197 = vld [vmem:[#allocation2 + $0xf8] sm:$0xff]
          %v1198 = vld [vmem:[#allocation2 + $0x100] sm:$0xff]
          %v1199 = vld [vmem:[#allocation2 + $0x108] sm:$0xff]
          %v1200 = vld [vmem:[#allocation2 + $0x110] sm:$0xff]
          %v1201 = vld [vmem:[#allocation2 + $0x118] sm:$0xff]
          %v1202 = vld [vmem:[#allocation2 + $0x120] sm:$0xff]
          %v1203 = vld [vmem:[#allocation2 + $0x128] sm:$0xff]
          %v1204 = vld [vmem:[#allocation2 + $0x130] sm:$0xff]
          %v1205 = vld [vmem:[#allocation2 + $0x138] sm:$0xff]
          %v1206 = vld [vmem:[#allocation2 + $0x140] sm:$0xff]
          %v1207 = vld [vmem:[#allocation2 + $0x148] sm:$0xff]
          %v1208 = vld [vmem:[#allocation2 + $0x150] sm:$0xff]
          %v1209 = vld [vmem:[#allocation2 + $0x158] sm:$0xff]
          %v1210 = vld [vmem:[#allocation2 + $0x160] sm:$0xff]
          %v1211 = vld [vmem:[#allocation2 + $0x168] sm:$0xff]
          %v1212 = vld [vmem:[#allocation2 + $0x170] sm:$0xff]
          %v1213 = vld [vmem:[#allocation2 + $0x178] sm:$0xff]
          %v1214 = vld [vmem:[#allocation2 + $0x180] sm:$0xff]
          %v1215 = vld [vmem:[#allocation2 + $0x188] sm:$0xff]
          %v1216 = vld [vmem:[#allocation2 + $0x190] sm:$0xff]
          %v1217 = vld [vmem:[#allocation2 + $0x198] sm:$0xff]
          %v1218 = vld [vmem:[#allocation2 + $0x1a0] sm:$0xff]
          %v1219 = vld [vmem:[#allocation2 + $0x1a8] sm:$0xff]
          %v1220 = vld [vmem:[#allocation2 + $0x1b0] sm:$0xff]
          %v1221 = vld [vmem:[#allocation2 + $0x1b8] sm:$0xff]
          %v1222 = vld [vmem:[#allocation2 + $0x1c0] sm:$0xff]
          %v1223 = vld [vmem:[#allocation2 + $0x1c8] sm:$0xff]
          %v1224 = vld [vmem:[#allocation2 + $0x1d0] sm:$0xff]
          %v1225 = vld [vmem:[#allocation2 + $0x1d8] sm:$0xff]
          %v1226 = vld [vmem:[#allocation2 + $0x1e0] sm:$0xff]
          %v1227 = vld [vmem:[#allocation2 + $0x1e8] sm:$0xff]
          %v1228 = vld [vmem:[#allocation2 + $0x1f0] sm:$0xff]
          %v1229 = vld [vmem:[#allocation2 + $0x1f8] sm:$0xff]
          %v1230 = vld [vmem:[#allocation8] sm:$0x1]
          %v1232 = vlaneseq
          %v1233 = vshrl.u32 %v1232, 7
          %v1234 = vsub.s32 0, %v1233
          %v1235 = vrot.slane %v1230, %v1234
          %v1237 = vmul.f32 %v1166, %v1235
          %v1238 = vmul.f32 %v1167, %v1235
          %v1239 = vmul.f32 %v1168, %v1235
          %v1240 = vmul.f32 %v1169, %v1235
          %v1241 = vmul.f32 %v1170, %v1235
          %v1242 = vmul.f32 %v1171, %v1235
          %v1243 = vmul.f32 %v1172, %v1235
          %v1244 = vmul.f32 %v1173, %v1235
          %v1245 = vmul.f32 %v1174, %v1235
          %v1246 = vmul.f32 %v1175, %v1235
          %v1247 = vmul.f32 %v1176, %v1235
          %v1248 = vmul.f32 %v1177, %v1235
          %v1249 = vmul.f32 %v1178, %v1235
          %v1250 = vmul.f32 %v1179, %v1235
          %v1251 = vmul.f32 %v1180, %v1235
          %v1252 = vmul.f32 %v1181, %v1235
          %v1253 = vmul.f32 %v1182, %v1235
          %v1254 = vmul.f32 %v1183, %v1235
          %v1255 = vmul.f32 %v1184, %v1235
          %v1256 = vmul.f32 %v1185, %v1235
          %v1257 = vmul.f32 %v1186, %v1235
          %v1258 = vmul.f32 %v1187, %v1235
          %v1259 = vmul.f32 %v1188, %v1235
          %v1260 = vmul.f32 %v1189, %v1235
          %v1261 = vmul.f32 %v1190, %v1235
          %v1262 = vmul.f32 %v1191, %v1235
          %v1263 = vmul.f32 %v1192, %v1235
          %v1264 = vmul.f32 %v1193, %v1235
          %v1265 = vmul.f32 %v1194, %v1235
          %v1266 = vmul.f32 %v1195, %v1235
          %v1267 = vmul.f32 %v1196, %v1235
          %v1268 = vmul.f32 %v1197, %v1235
          %v1269 = vmul.f32 %v1198, %v1235
          %v1270 = vmul.f32 %v1199, %v1235
          %v1271 = vmul.f32 %v1200, %v1235
          %v1272 = vmul.f32 %v1201, %v1235
          %v1273 = vmul.f32 %v1202, %v1235
          %v1274 = vmul.f32 %v1203, %v1235
          %v1275 = vmul.f32 %v1204, %v1235
          %v1276 = vmul.f32 %v1205, %v1235
          %v1277 = vmul.f32 %v1206, %v1235
          %v1278 = vmul.f32 %v1207, %v1235
          %v1279 = vmul.f32 %v1208, %v1235
          %v1280 = vmul.f32 %v1209, %v1235
          %v1281 = vmul.f32 %v1210, %v1235
          %v1282 = vmul.f32 %v1211, %v1235
          %v1283 = vmul.f32 %v1212, %v1235
          %v1284 = vmul.f32 %v1213, %v1235
          %v1285 = vmul.f32 %v1214, %v1235
          %v1286 = vmul.f32 %v1215, %v1235
          %v1287 = vmul.f32 %v1216, %v1235
          %v1288 = vmul.f32 %v1217, %v1235
          %v1289 = vmul.f32 %v1218, %v1235
          %v1290 = vmul.f32 %v1219, %v1235
          %v1291 = vmul.f32 %v1220, %v1235
          %v1292 = vmul.f32 %v1221, %v1235
          %v1293 = vmul.f32 %v1222, %v1235
          %v1294 = vmul.f32 %v1223, %v1235
          %v1295 = vmul.f32 %v1224, %v1235
          %v1296 = vmul.f32 %v1225, %v1235
          %v1297 = vmul.f32 %v1226, %v1235
          %v1298 = vmul.f32 %v1227, %v1235
          %v1299 = vmul.f32 %v1228, %v1235
          %v1300 = vmul.f32 %v1229, %v1235
          %v1301 = vld [vmem:[#allocation9] sm:$0x1]
          %v1303 = vlaneseq
          %v1304 = vshrl.u32 %v1303, 7
          %v1305 = vsub.s32 0, %v1304
          %v1306 = vrot.slane %v1301, %v1305
          %v1308 = vadd.f32 %v1237, %v1306
          %v1309 = vadd.f32 %v1238, %v1306
          %v1310 = vadd.f32 %v1239, %v1306
          %v1311 = vadd.f32 %v1240, %v1306
          %v1312 = vadd.f32 %v1241, %v1306
          %v1313 = vadd.f32 %v1242, %v1306
          %v1314 = vadd.f32 %v1243, %v1306
          %v1315 = vadd.f32 %v1244, %v1306
          %v1316 = vadd.f32 %v1245, %v1306
          %v1317 = vadd.f32 %v1246, %v1306
          %v1318 = vadd.f32 %v1247, %v1306
          %v1319 = vadd.f32 %v1248, %v1306
          %v1320 = vadd.f32 %v1249, %v1306
          %v1321 = vadd.f32 %v1250, %v1306
          %v1322 = vadd.f32 %v1251, %v1306
          %v1323 = vadd.f32 %v1252, %v1306
          %v1324 = vadd.f32 %v1253, %v1306
          %v1325 = vadd.f32 %v1254, %v1306
          %v1326 = vadd.f32 %v1255, %v1306
          %v1327 = vadd.f32 %v1256, %v1306
          %v1328 = vadd.f32 %v1257, %v1306
          %v1329 = vadd.f32 %v1258, %v1306
          %v1330 = vadd.f32 %v1259, %v1306
          %v1331 = vadd.f32 %v1260, %v1306
          %v1332 = vadd.f32 %v1261, %v1306
          %v1333 = vadd.f32 %v1262, %v1306
          %v1334 = vadd.f32 %v1263, %v1306
          %v1335 = vadd.f32 %v1264, %v1306
          %v1336 = vadd.f32 %v1265, %v1306
          %v1337 = vadd.f32 %v1266, %v1306
          %v1338 = vadd.f32 %v1267, %v1306
          %v1339 = vadd.f32 %v1268, %v1306
          %v1340 = vadd.f32 %v1269, %v1306
          %v1341 = vadd.f32 %v1270, %v1306
          %v1342 = vadd.f32 %v1271, %v1306
          %v1343 = vadd.f32 %v1272, %v1306
          %v1344 = vadd.f32 %v1273, %v1306
          %v1345 = vadd.f32 %v1274, %v1306
          %v1346 = vadd.f32 %v1275, %v1306
          %v1347 = vadd.f32 %v1276, %v1306
          %v1348 = vadd.f32 %v1277, %v1306
          %v1349 = vadd.f32 %v1278, %v1306
          %v1350 = vadd.f32 %v1279, %v1306
          %v1351 = vadd.f32 %v1280, %v1306
          %v1352 = vadd.f32 %v1281, %v1306
          %v1353 = vadd.f32 %v1282, %v1306
          %v1354 = vadd.f32 %v1283, %v1306
          %v1355 = vadd.f32 %v1284, %v1306
          %v1356 = vadd.f32 %v1285, %v1306
          %v1357 = vadd.f32 %v1286, %v1306
          %v1358 = vadd.f32 %v1287, %v1306
          %v1359 = vadd.f32 %v1288, %v1306
          %v1360 = vadd.f32 %v1289, %v1306
          %v1361 = vadd.f32 %v1290, %v1306
          %v1362 = vadd.f32 %v1291, %v1306
          %v1363 = vadd.f32 %v1292, %v1306
          %v1364 = vadd.f32 %v1293, %v1306
          %v1365 = vadd.f32 %v1294, %v1306
          %v1366 = vadd.f32 %v1295, %v1306
          %v1367 = vadd.f32 %v1296, %v1306
          %v1368 = vadd.f32 %v1297, %v1306
          %v1369 = vadd.f32 %v1298, %v1306
          %v1370 = vadd.f32 %v1299, %v1306
          %v1371 = vadd.f32 %v1300, %v1306
          %v1372 = vmul.f32 %v1308, 0.01
          %v1373 = vmul.f32 %v1309, 0.01
          %v1374 = vmul.f32 %v1310, 0.01
          %v1375 = vmul.f32 %v1311, 0.01
          %v1376 = vmul.f32 %v1312, 0.01
          %v1377 = vmul.f32 %v1313, 0.01
          %v1378 = vmul.f32 %v1314, 0.01
          %v1379 = vmul.f32 %v1315, 0.01
          %v1380 = vmul.f32 %v1316, 0.01
          %v1381 = vmul.f32 %v1317, 0.01
          %v1382 = vmul.f32 %v1318, 0.01
          %v1383 = vmul.f32 %v1319, 0.01
          %v1384 = vmul.f32 %v1320, 0.01
          %v1385 = vmul.f32 %v1321, 0.01
          %v1386 = vmul.f32 %v1322, 0.01
          %v1387 = vmul.f32 %v1323, 0.01
          %v1388 = vmul.f32 %v1324, 0.01
          %v1389 = vmul.f32 %v1325, 0.01
          %v1390 = vmul.f32 %v1326, 0.01
          %v1391 = vmul.f32 %v1327, 0.01
          %v1392 = vmul.f32 %v1328, 0.01
          %v1393 = vmul.f32 %v1329, 0.01
          %v1394 = vmul.f32 %v1330, 0.01
          %v1395 = vmul.f32 %v1331, 0.01
          %v1396 = vmul.f32 %v1332, 0.01
          %v1397 = vmul.f32 %v1333, 0.01
          %v1398 = vmul.f32 %v1334, 0.01
          %v1399 = vmul.f32 %v1335, 0.01
          %v1400 = vmul.f32 %v1336, 0.01
          %v1401 = vmul.f32 %v1337, 0.01
          %v1402 = vmul.f32 %v1338, 0.01
          %v1403 = vmul.f32 %v1339, 0.01
          %v1404 = vmul.f32 %v1340, 0.01
          %v1405 = vmul.f32 %v1341, 0.01
          %v1406 = vmul.f32 %v1342, 0.01
          %v1407 = vmul.f32 %v1343, 0.01
          %v1408 = vmul.f32 %v1344, 0.01
          %v1409 = vmul.f32 %v1345, 0.01
          %v1410 = vmul.f32 %v1346, 0.01
          %v1411 = vmul.f32 %v1347, 0.01
          %v1412 = vmul.f32 %v1348, 0.01
          %v1413 = vmul.f32 %v1349, 0.01
          %v1414 = vmul.f32 %v1350, 0.01
          %v1415 = vmul.f32 %v1351, 0.01
          %v1416 = vmul.f32 %v1352, 0.01
          %v1417 = vmul.f32 %v1353, 0.01
          %v1418 = vmul.f32 %v1354, 0.01
          %v1419 = vmul.f32 %v1355, 0.01
          %v1420 = vmul.f32 %v1356, 0.01
          %v1421 = vmul.f32 %v1357, 0.01
          %v1422 = vmul.f32 %v1358, 0.01
          %v1423 = vmul.f32 %v1359, 0.01
          %v1424 = vmul.f32 %v1360, 0.01
          %v1425 = vmul.f32 %v1361, 0.01
          %v1426 = vmul.f32 %v1362, 0.01
          %v1427 = vmul.f32 %v1363, 0.01
          %v1428 = vmul.f32 %v1364, 0.01
          %v1429 = vmul.f32 %v1365, 0.01
          %v1430 = vmul.f32 %v1366, 0.01
          %v1431 = vmul.f32 %v1367, 0.01
          %v1432 = vmul.f32 %v1368, 0.01
          %v1433 = vmul.f32 %v1369, 0.01
          %v1434 = vmul.f32 %v1370, 0.01
          %v1435 = vmul.f32 %v1371, 0.01
          %v1436 = vmax.f32 %v1308, %v1372
          %v1437 = vmax.f32 %v1309, %v1373
          %v1438 = vmax.f32 %v1310, %v1374
          %v1439 = vmax.f32 %v1311, %v1375
          %v1440 = vmax.f32 %v1312, %v1376
          %v1441 = vmax.f32 %v1313, %v1377
          %v1442 = vmax.f32 %v1314, %v1378
          %v1443 = vmax.f32 %v1315, %v1379
          %v1444 = vmax.f32 %v1316, %v1380
          %v1445 = vmax.f32 %v1317, %v1381
          %v1446 = vmax.f32 %v1318, %v1382
          %v1447 = vmax.f32 %v1319, %v1383
          %v1448 = vmax.f32 %v1320, %v1384
          %v1449 = vmax.f32 %v1321, %v1385
          %v1450 = vmax.f32 %v1322, %v1386
          %v1451 = vmax.f32 %v1323, %v1387
          %v1452 = vmax.f32 %v1324, %v1388
          %v1453 = vmax.f32 %v1325, %v1389
          %v1454 = vmax.f32 %v1326, %v1390
          %v1455 = vmax.f32 %v1327, %v1391
          %v1456 = vmax.f32 %v1328, %v1392
          %v1457 = vmax.f32 %v1329, %v1393
          %v1458 = vmax.f32 %v1330, %v1394
          %v1459 = vmax.f32 %v1331, %v1395
          %v1460 = vmax.f32 %v1332, %v1396
          %v1461 = vmax.f32 %v1333, %v1397
          %v1462 = vmax.f32 %v1334, %v1398
          %v1463 = vmax.f32 %v1335, %v1399
          %v1464 = vmax.f32 %v1336, %v1400
          %v1465 = vmax.f32 %v1337, %v1401
          %v1466 = vmax.f32 %v1338, %v1402
          %v1467 = vmax.f32 %v1339, %v1403
          %v1468 = vmax.f32 %v1340, %v1404
          %v1469 = vmax.f32 %v1341, %v1405
          %v1470 = vmax.f32 %v1342, %v1406
          %v1471 = vmax.f32 %v1343, %v1407
          %v1472 = vmax.f32 %v1344, %v1408
          %v1473 = vmax.f32 %v1345, %v1409
          %v1474 = vmax.f32 %v1346, %v1410
          %v1475 = vmax.f32 %v1347, %v1411
          %v1476 = vmax.f32 %v1348, %v1412
          %v1477 = vmax.f32 %v1349, %v1413
          %v1478 = vmax.f32 %v1350, %v1414
          %v1479 = vmax.f32 %v1351, %v1415
          %v1480 = vmax.f32 %v1352, %v1416
          %v1481 = vmax.f32 %v1353, %v1417
          %v1482 = vmax.f32 %v1354, %v1418
          %v1483 = vmax.f32 %v1355, %v1419
          %v1484 = vmax.f32 %v1356, %v1420
          %v1485 = vmax.f32 %v1357, %v1421
          %v1486 = vmax.f32 %v1358, %v1422
          %v1487 = vmax.f32 %v1359, %v1423
          %v1488 = vmax.f32 %v1360, %v1424
          %v1489 = vmax.f32 %v1361, %v1425
          %v1490 = vmax.f32 %v1362, %v1426
          %v1491 = vmax.f32 %v1363, %v1427
          %v1492 = vmax.f32 %v1364, %v1428
          %v1493 = vmax.f32 %v1365, %v1429
          %v1494 = vmax.f32 %v1366, %v1430
          %v1495 = vmax.f32 %v1367, %v1431
          %v1496 = vmax.f32 %v1368, %v1432
          %v1497 = vmax.f32 %v1369, %v1433
          %v1498 = vmax.f32 %v1370, %v1434
          %v1499 = vmax.f32 %v1371, %v1435
          %1500 = vst [vmem:[#allocation11] sm:$0xff] %v1436
          %1501 = vst [vmem:[#allocation11 + $0x8] sm:$0xff] %v1437
          %1502 = vst [vmem:[#allocation11 + $0x10] sm:$0xff] %v1438
          %1503 = vst [vmem:[#allocation11 + $0x18] sm:$0xff] %v1439
          %1504 = vst [vmem:[#allocation11 + $0x20] sm:$0xff] %v1440
          %1505 = vst [vmem:[#allocation11 + $0x28] sm:$0xff] %v1441
          %1506 = vst [vmem:[#allocation11 + $0x30] sm:$0xff] %v1442
          %1507 = vst [vmem:[#allocation11 + $0x38] sm:$0xff] %v1443
          %1508 = vst [vmem:[#allocation11 + $0x40] sm:$0xff] %v1444
          %1509 = vst [vmem:[#allocation11 + $0x48] sm:$0xff] %v1445
          %1510 = vst [vmem:[#allocation11 + $0x50] sm:$0xff] %v1446
          %1511 = vst [vmem:[#allocation11 + $0x58] sm:$0xff] %v1447
          %1512 = vst [vmem:[#allocation11 + $0x60] sm:$0xff] %v1448
          %1513 = vst [vmem:[#allocation11 + $0x68] sm:$0xff] %v1449
          %1514 = vst [vmem:[#allocation11 + $0x70] sm:$0xff] %v1450
          %1515 = vst [vmem:[#allocation11 + $0x78] sm:$0xff] %v1451
          %1516 = vst [vmem:[#allocation11 + $0x80] sm:$0xff] %v1452
          %1517 = vst [vmem:[#allocation11 + $0x88] sm:$0xff] %v1453
          %1518 = vst [vmem:[#allocation11 + $0x90] sm:$0xff] %v1454
          %1519 = vst [vmem:[#allocation11 + $0x98] sm:$0xff] %v1455
          %1520 = vst [vmem:[#allocation11 + $0xa0] sm:$0xff] %v1456
          %1521 = vst [vmem:[#allocation11 + $0xa8] sm:$0xff] %v1457
          %1522 = vst [vmem:[#allocation11 + $0xb0] sm:$0xff] %v1458
          %1523 = vst [vmem:[#allocation11 + $0xb8] sm:$0xff] %v1459
          %1524 = vst [vmem:[#allocation11 + $0xc0] sm:$0xff] %v1460
          %1525 = vst [vmem:[#allocation11 + $0xc8] sm:$0xff] %v1461
          %1526 = vst [vmem:[#allocation11 + $0xd0] sm:$0xff] %v1462
          %1527 = vst [vmem:[#allocation11 + $0xd8] sm:$0xff] %v1463
          %1528 = vst [vmem:[#allocation11 + $0xe0] sm:$0xff] %v1464
          %1529 = vst [vmem:[#allocation11 + $0xe8] sm:$0xff] %v1465
          %1530 = vst [vmem:[#allocation11 + $0xf0] sm:$0xff] %v1466
          %1531 = vst [vmem:[#allocation11 + $0xf8] sm:$0xff] %v1467
          %1532 = vst [vmem:[#allocation11 + $0x100] sm:$0xff] %v1468
          %1533 = vst [vmem:[#allocation11 + $0x108] sm:$0xff] %v1469
          %1534 = vst [vmem:[#allocation11 + $0x110] sm:$0xff] %v1470
          %1535 = vst [vmem:[#allocation11 + $0x118] sm:$0xff] %v1471
          %1536 = vst [vmem:[#allocation11 + $0x120] sm:$0xff] %v1472
          %1537 = vst [vmem:[#allocation11 + $0x128] sm:$0xff] %v1473
          %1538 = vst [vmem:[#allocation11 + $0x130] sm:$0xff] %v1474
          %1539 = vst [vmem:[#allocation11 + $0x138] sm:$0xff] %v1475
          %1540 = vst [vmem:[#allocation11 + $0x140] sm:$0xff] %v1476
          %1541 = vst [vmem:[#allocation11 + $0x148] sm:$0xff] %v1477
          %1542 = vst [vmem:[#allocation11 + $0x150] sm:$0xff] %v1478
          %1543 = vst [vmem:[#allocation11 + $0x158] sm:$0xff] %v1479
          %1544 = vst [vmem:[#allocation11 + $0x160] sm:$0xff] %v1480
          %1545 = vst [vmem:[#allocation11 + $0x168] sm:$0xff] %v1481
          %1546 = vst [vmem:[#allocation11 + $0x170] sm:$0xff] %v1482
          %1547 = vst [vmem:[#allocation11 + $0x178] sm:$0xff] %v1483
          %1548 = vst [vmem:[#allocation11 + $0x180] sm:$0xff] %v1484
          %1549 = vst [vmem:[#allocation11 + $0x188] sm:$0xff] %v1485
          %1550 = vst [vmem:[#allocation11 + $0x190] sm:$0xff] %v1486
          %1551 = vst [vmem:[#allocation11 + $0x198] sm:$0xff] %v1487
          %1552 = vst [vmem:[#allocation11 + $0x1a0] sm:$0xff] %v1488
          %1553 = vst [vmem:[#allocation11 + $0x1a8] sm:$0xff] %v1489
          %1554 = vst [vmem:[#allocation11 + $0x1b0] sm:$0xff] %v1490
          %1555 = vst [vmem:[#allocation11 + $0x1b8] sm:$0xff] %v1491
          %1556 = vst [vmem:[#allocation11 + $0x1c0] sm:$0xff] %v1492
          %1557 = vst [vmem:[#allocation11 + $0x1c8] sm:$0xff] %v1493
          %1558 = vst [vmem:[#allocation11 + $0x1d0] sm:$0xff] %v1494
          %1559 = vst [vmem:[#allocation11 + $0x1d8] sm:$0xff] %v1495
          %1560 = vst [vmem:[#allocation11 + $0x1e0] sm:$0xff] %v1496
          %1561 = vst [vmem:[#allocation11 + $0x1e8] sm:$0xff] %v1497
          %1562 = vst [vmem:[#allocation11 + $0x1f0] sm:$0xff] %v1498
          %1563 = vst [vmem:[#allocation11 + $0x1f8] sm:$0xff] %v1499
        $region60: #{tpu_custom_call.1} parent=35 // pred_fallthru
          _
        // Predicated region
        $region61: #{tpu_custom_call.1} parent=35 // pred_check
          %p1564 = pneg %p149
        $region62: #{tpu_custom_call.1} parent=35 // pred_check_branch
          %1566 = sbr.rel (%p1564) target = $region64
        $region63: #{tpu_custom_call.1} parent=35 // pred_region
          %s1567 = smul.u32 64, %s27
          %s1569 = ssub.s32 8192, 8192
          %1570 = vsyncadd [#allocation5], %s1569
          %s1571 = smul.addr %s1567, 128
          %s1572 = scalar_lea.hbm %s4, %s1571
          %s1573 = sshll.u32 [#allocation11], 4
          %s1574 = int_to_ptr.vmem [resolvable:$true] %s1573
          %1579 = dma.vmem_to_hbm [thread:$0]  %s1574, 8192, %s1572, [#allocation5], 128, 128, 8
        $region64: #{tpu_custom_call.1} parent=35 // pred_fallthru
          _
        // Predicated region
        $region65: #{tpu_custom_call.1} parent=35 // pred_check
          %p1580 = pneg %p149
        $region66: #{tpu_custom_call.1} parent=35 // pred_check_branch
          %1582 = sbr.rel (%p1580) target = $region68
        $region67: #{tpu_custom_call.1} parent=35 // pred_region
          %1583 = dma.done [#allocation5], 8192
        $region68: #{tpu_custom_call.1} parent=35 // pred_fallthru
          _
      $region36: #{tpu_custom_call.1} parent=5 // pred_fallthru
        _
      %p1584 = scmp.le.s32.totalorder 2, %s18
      // Predicated region
      $region69: #{tpu_custom_call.1} parent=5 // pred_check
        %p1585 = pneg %p1584
      $region70: #{tpu_custom_call.1} parent=5 // pred_check_branch
        %1587 = sbr.rel (%p1585) target = $region72
      $region71: #{tpu_custom_call.1} parent=5 // pred_region
        %s1588 = ssub.s32 %s18, 2
      $region72: #{tpu_custom_call.1} parent=5 // pred_fallthru
        _
    $region6: #{tpu_custom_call.1} parent=1 // loop_footer
      %s22 = sadd.s32 1, %s18
    $region7: #{tpu_custom_call.1} parent=1 // loop_footer_branch
      %17 = sbr.rel target = $region3
    $region8: #{tpu_custom_call.1} parent=1 // loop_exit
      _
    %1589 = vsyncpa [#allocation4], 1
    %s1590 = scalar_lea.sflag [#allocation4], 1
    %1591 = vsyncpa %s1590, 1
    %1592 = vsyncpa [#allocation7], 1
    %s1593 = scalar_lea.sflag [#allocation7], 1
    %1594 = vsyncpa %s1593, 1
    %1595 = vsyncpa [#allocation10], 1
    %1596 = vsyncpa [#allocation5], 1
    %s1597 = scalar_lea.sflag [#allocation5], 1
    %1598 = vsyncpa %s1597, 1

</llo_original>
